<compile_context>
chip_gen: v6e
topology: v6e:2x2x1
jax: 0.10.0
libtpu: 0.0.40
codegen_flags: <defaults>
</compile_context>

<pallas_src>
import functools

import jax
import jax.numpy as jnp
from jax.experimental import pallas as pl
from jax.experimental.pallas import tpu as pltpu

BN_EPS = 1e-5


def _round_up(x, m):
    return ((x + m - 1) // m) * m


# ----------------------------------------------------------------------------
# Pallas kernel: tiled (M,K)@(K,N) GEMM with fused bias + activation epilogue
# ----------------------------------------------------------------------------
def _conv_mm_kernel(x_ref, w_ref, b_ref, o_ref, acc_ref, *, act):
    @pl.when(pl.program_id(2) == 0)
    def _init():
        acc_ref[...] = jnp.zeros_like(acc_ref)

    acc_ref[...] += jnp.dot(
        x_ref[...], w_ref[...], preferred_element_type=jnp.float32
    )

    @pl.when(pl.program_id(2) == pl.num_programs(2) - 1)
    def _finalize():
        acc = acc_ref[...] + b_ref[...]
        if act == "lrelu":
            acc = jnp.where(acc >= 0.0, acc, 0.2 * acc)
        elif act == "sigmoid":
            acc = 1.0 / (1.0 + jnp.exp(-acc))
        # act == "none": identity
        o_ref[...] = acc.astype(o_ref.dtype)


def _pick_k_tile(k_dim, max_tile=1024):
    """Largest multiple of 128 that divides k_dim and is <= max_tile."""
    if k_dim <= max_tile:
        return k_dim
    for cand in range(max_tile, 127, -128):
        if k_dim % cand == 0:
            return cand
    return k_dim


def conv_matmul(patches, w_mat, bias, act):
    """patches (M,K) bf16, w_mat (K,N) bf16, bias (1,N) f32 -> (M,N) f32."""
    m, kdim = patches.shape
    _, n = w_mat.shape

    tm = min(512, _round_up(m, 8))
    mp = _round_up(m, tm)
    if mp != m:
        patches = jnp.pad(patches, ((0, mp - m), (0, 0)))
    tn = 256 if n % 256 == 0 else 128
    tk = _pick_k_tile(kdim)

    cost = pl.CostEstimate(
        flops=2 * mp * kdim * n,
        transcendentals=mp * n if act == "sigmoid" else 0,
        bytes_accessed=mp * kdim * 2 + kdim * n * 2 + n * 4 + mp * n * 4,
    )

    out = pl.pallas_call(
        functools.partial(_conv_mm_kernel, act=act),
        out_shape=jax.ShapeDtypeStruct((mp, n), jnp.float32),
        grid_spec=pltpu.PrefetchScalarGridSpec(
            num_scalar_prefetch=0,
            grid=(mp // tm, n // tn, kdim // tk),
            in_specs=[
                pl.BlockSpec((tm, tk), lambda i, j, k: (i, k)),
                pl.BlockSpec((tk, tn), lambda i, j, k: (k, j)),
                pl.BlockSpec((1, tn), lambda i, j, k: (0, j)),
            ],
            out_specs=pl.BlockSpec((tm, tn), lambda i, j, k: (i, j)),
            scratch_shapes=[pltpu.VMEM((tm, tn), jnp.float32)],
        ),
        compiler_params=pltpu.CompilerParams(
            dimension_semantics=("parallel", "parallel", "arbitrary"),
            vmem_limit_bytes=32 * 1024 * 1024,
        ),
        cost_estimate=cost,
    )(patches, w_mat, bias)
    return out[:m] if mp != m else out


# ----------------------------------------------------------------------------
# JAX glue: NHWC im2col (no NCHW round-trips between layers)
# ----------------------------------------------------------------------------
def _im2col_nhwc(x, k, stride, pad):
    """x (B,H,W,C) -> patches (B*Ho*Wo, k*k*C) flattened in (ki, kj, c) order."""
    b, h, w, c = x.shape
    if pad:
        x = jnp.pad(x, ((0, 0), (pad, pad), (pad, pad), (0, 0)))
    ho = (h + 2 * pad - k) // stride + 1
    wo = (w + 2 * pad - k) // stride + 1
    cols = []
    for i in range(k):
        for j in range(k):
            cols.append(x[:, i:i + ho * stride:stride, j:j + wo * stride:stride, :])
    patches = jnp.stack(cols, axis=3)                 # (B, Ho, Wo, k*k, C)
    return patches.reshape(b * ho * wo, k * k * c), ho, wo
    # TODO(synk): fuse patch extraction into the Pallas kernel (overlapping-
    # window index_map) to avoid materializing the k^2-expanded patches in HBM
    # (biggest win on bandwidth-poor v5e).


def apply_layer(x_nhwc, layer):
    """One Conv2d(+folded eval-BN)+activation layer on padded-NHWC input."""
    b = x_nhwc.shape[0]
    patches, ho, wo = _im2col_nhwc(x_nhwc, layer["k"], layer["stride"], layer["pad"])
    out = conv_matmul(
        patches.astype(jnp.bfloat16), layer["w_mat"], layer["bias"], layer["act"]
    )
    return out.reshape(b, ho, wo, layer["cout_pad"])


# ----------------------------------------------------------------------------
# Parameter construction (DCGAN init: conv ~ N(0,.02), BN gamma ~ N(1,.02))
# ----------------------------------------------------------------------------
def _make_conv_layer(key, cin, cout, k, stride, pad, cin_pad, use_bn, act):
    kw, kg = jax.random.split(key)
    w = 0.02 * jax.random.normal(kw, (cout, cin, k, k), jnp.float32)
    if use_bn:
        gamma = 1.0 + 0.02 * jax.random.normal(kg, (cout,), jnp.float32)
        beta = jnp.zeros((cout,), jnp.float32)
        running_mean = jnp.zeros((cout,), jnp.float32)
        running_var = jnp.ones((cout,), jnp.float32)
        scale = gamma / jnp.sqrt(running_var + BN_EPS)
        bias = beta - running_mean * scale
    else:
        scale = jnp.ones((cout,), jnp.float32)
        bias = jnp.zeros((cout,), jnp.float32)

    cout_pad = _round_up(cout, 128)
    # Fold BN scale into weights, pad Cin/Cout, flatten to (k*k*cin_pad, cout_pad).
    w = w * scale[:, None, None, None]
    w = jnp.pad(w, ((0, 0), (0, cin_pad - cin), (0, 0), (0, 0)))
    w_mat = jnp.transpose(w, (2, 3, 1, 0)).reshape(k * k * cin_pad, cout)
    w_mat = jnp.pad(w_mat, ((0, 0), (0, cout_pad - cout))).astype(jnp.bfloat16)
    bias_pad = jnp.pad(bias, (0, cout_pad - cout)).reshape(1, cout_pad)
    return dict(
        w_mat=w_mat, bias=bias_pad, k=k, stride=stride, pad=pad, act=act,
        cin_real=cin, cin_pad=cin_pad, cout_real=cout, cout_pad=cout_pad,
    )


def make_discriminator_params(key, input_size, num_input_channels, n_features,
                              extra_layers=0):
    assert input_size % 16 == 0, "Input size should be a multiple of 16"
    keys = iter(jax.random.split(key, 64))
    feature_layers = []

    # initial conv: Cin -> nf, k4 s2 p1, LeakyReLU(0.2), no BN
    cin_pad = _round_up(num_input_channels, 8)
    feature_layers.append(_make_conv_layer(
        next(keys), num_input_channels, n_features, 4, 2, 1, cin_pad,
        use_bn=False, act="lrelu"))
    cin_pad = feature_layers[-1]["cout_pad"]
    feat = n_features

    # extra layers: nf -> nf, k3 s1 p1, BN, LeakyReLU(0.2)
    for _ in range(extra_layers):
        feature_layers.append(_make_conv_layer(
            next(keys), feat, feat, 3, 1, 1, cin_pad, use_bn=True, act="lrelu"))
        cin_pad = feature_layers[-1]["cout_pad"]

    # pyramid: double channels, halve resolution while size > 4
    size = input_size // 2
    while size > 4:
        feature_layers.append(_make_conv_layer(
            next(keys), feat, feat * 2, 4, 2, 1, cin_pad, use_bn=True, act="lrelu"))
        feat *= 2
        cin_pad = feature_layers[-1]["cout_pad"]
        size //= 2

    # classifier: final conv feat -> 1, k4 s1 p0, Sigmoid (fused in-kernel)
    classifier = _make_conv_layer(
        next(keys), feat, 1, 4, 1, 0, cin_pad, use_bn=False, act="sigmoid")

    return dict(
        features=feature_layers,
        classifier=classifier,
        feat_channels=feat,
        feat_size=size,  # == 4
    )


# ----------------------------------------------------------------------------
# Discriminator.forward: features (encoder minus last conv) -> classifier+sigmoid
# ----------------------------------------------------------------------------
def discriminator_forward(params, x_nchw):
    """x: (B,C,H,W) f32 -> (classifier (B,), features (B, feat, 4, 4))."""
    first = params["features"][0]
    x = jnp.transpose(x_nchw, (0, 2, 3, 1))              # NHWC once at the boundary
    c = x.shape[-1]
    if first["cin_pad"] > c:
        x = jnp.pad(x, ((0, 0), (0, 0), (0, 0), (0, first["cin_pad"] - c)))

    for layer in params["features"]:
        x = apply_layer(x, layer)
    feat_pad = x                                          # (B, 4, 4, Cpad)

    cls = apply_layer(feat_pad, params["classifier"])     # (B, 1, 1, 128), sigmoid
    classifier = cls[:, 0, 0, 0]                          # == .view(-1,1).squeeze(1)

    features = jnp.transpose(
        feat_pad[..., :params["feat_channels"]], (0, 3, 1, 2))  # back to NCHW
    return classifier, features


if __name__ == "__main__":
    INPUT_SIZE = 16       # must be a multiple of 16
    NUM_CHANNELS = 3
    N_FEATURES = 8
    BATCH = 2

    root = jax.random.PRNGKey(0)
    pkey, xkey = jax.random.split(root)
    params = make_discriminator_params(pkey, INPUT_SIZE, NUM_CHANNELS, N_FEATURES)
    x = jax.random.normal(
        xkey, (BATCH, NUM_CHANNELS, INPUT_SIZE, INPUT_SIZE), jnp.float32)

    fwd = jax.jit(lambda b: discriminator_forward(params, b))
    classifier, features = fwd(x)
    jax.block_until_ready((classifier, features))

    assert classifier.shape == (BATCH,), classifier.shape
    assert features.shape == (
        BATCH, params["feat_channels"], params["feat_size"], params["feat_size"]
    ), features.shape
    assert bool(jnp.all((classifier >= 0.0) & (classifier <= 1.0)))
    print("KERNEL_OK")
</pallas_src>

<mosaic_0001>
module attributes {stable_mosaic.version = 11 : i64} {
  func.func @_conv_mm_kernel(%arg0: i32, %arg1: i32, %arg2: i32, %arg3: memref<128x128xbf16, #tpu.memory_space<vmem>>, %arg4: memref<128x128xbf16, #tpu.memory_space<vmem>>, %arg5: memref<1x128xf32, #tpu.memory_space<vmem>>, %arg6: memref<128x128xf32, #tpu.memory_space<vmem>>, %arg7: memref<128x128xf32, #tpu.memory_space<vmem>>) attributes {dimension_semantics = [#tpu.dimension_semantics<parallel>, #tpu.dimension_semantics<parallel>, #tpu.dimension_semantics<arbitrary>], iteration_bounds = array<i64: 1, 1, 1>, scalar_prefetch = 0 : i64, scratch_operands = 1 : i64, tpu.core_type = #tpu.core_type<tc>, window_params = [{transform_indices = @transform_0, window_bounds = array<i64: 128, 128>}, {transform_indices = @transform_1, window_bounds = array<i64: 128, 128>}, {transform_indices = @transform_2, window_bounds = array<i64: 1, 128>}, {transform_indices = @transform_3, window_bounds = array<i64: 128, 128>}]} {
    %c0_i32 = arith.constant 0 : i32
    %0 = arith.cmpi eq, %arg2, %c0_i32 : i32
    %1 = arith.extui %0 : i1 to i32
    %c0_i32_0 = arith.constant 0 : i32
    %2 = arith.cmpi ne, %1, %c0_i32_0 : i32
    scf.if %2 {
      %cst_10 = arith.constant 0.000000e+00 : f32
      %12 = vector.broadcast %cst_10 : f32 to vector<128x128xf32>
      %c0_11 = arith.constant 0 : index
      %c0_12 = arith.constant 0 : index
      %13 = vector.load %arg7[%c0_11, %c0_12] : memref<128x128xf32, #tpu.memory_space<vmem>>, vector<128x128xf32>
      tpu.vector_store %arg7[%c0_11, %c0_12], %12 {strides = array<i32>} : memref<128x128xf32, #tpu.memory_space<vmem>>, vector<128x128xf32>,
    } else {
    }
    %c0 = arith.constant 0 : index
    %c0_1 = arith.constant 0 : index
    %3 = vector.load %arg7[%c0, %c0_1] : memref<128x128xf32, #tpu.memory_space<vmem>>, vector<128x128xf32>
    %c0_2 = arith.constant 0 : index
    %c0_3 = arith.constant 0 : index
    %4 = vector.load %arg3[%c0_2, %c0_3] : memref<128x128xbf16, #tpu.memory_space<vmem>>, vector<128x128xbf16>
    %c0_4 = arith.constant 0 : index
    %c0_5 = arith.constant 0 : index
    %5 = vector.load %arg4[%c0_4, %c0_5] : memref<128x128xbf16, #tpu.memory_space<vmem>>, vector<128x128xbf16>
    %cst = arith.constant dense<0.000000e+00> : vector<128x128xf32>
    %6 = tpu.matmul %4, %5, %cst {dimension_numbers = #tpu.dot_dimension_numbers<[1], [0], [0], [1], [0, 0, 1, 1], [], []>} : vector<128x128xbf16>, vector<128x128xbf16>, vector<128x128xf32> -> vector<128x128xf32>
    %7 = arith.addf %3, %6 : vector<128x128xf32>
    %c0_6 = arith.constant 0 : index
    %c0_7 = arith.constant 0 : index
    %8 = vector.load %arg7[%c0_6, %c0_7] : memref<128x128xf32, #tpu.memory_space<vmem>>, vector<128x128xf32>
    tpu.vector_store %arg7[%c0_6, %c0_7], %7 {strides = array<i32>} : memref<128x128xf32, #tpu.memory_space<vmem>>, vector<128x128xf32>,
    %c0_i32_8 = arith.constant 0 : i32
    %9 = arith.cmpi eq, %arg2, %c0_i32_8 : i32
    %10 = arith.extui %9 : i1 to i32
    %c0_i32_9 = arith.constant 0 : i32
    %11 = arith.cmpi ne, %10, %c0_i32_9 : i32
    scf.if %11 {
      %c0_10 = arith.constant 0 : index
      %c0_11 = arith.constant 0 : index
      %12 = vector.load %arg7[%c0_10, %c0_11] : memref<128x128xf32, #tpu.memory_space<vmem>>, vector<128x128xf32>
      %c0_12 = arith.constant 0 : index
      %c0_13 = arith.constant 0 : index
      %13 = vector.load %arg5[%c0_12, %c0_13] : memref<1x128xf32, #tpu.memory_space<vmem>>, vector<1x128xf32>
      %14 = vector.broadcast %13 : vector<1x128xf32> to vector<128x128xf32>
      %15 = arith.addf %12, %14 : vector<128x128xf32>
      %cst_14 = arith.constant 0.000000e+00 : f32
      %16 = vector.broadcast %cst_14 : f32 to vector<128x128xf32>
      %17 = arith.cmpf oge, %15, %16 : vector<128x128xf32>
      %cst_15 = arith.constant 2.000000e-01 : f32
      %18 = vector.broadcast %cst_15 : f32 to vector<128x128xf32>
      %19 = arith.mulf %18, %15 : vector<128x128xf32>
      %20 = arith.select %17, %15, %19 : vector<128x128xi1>, vector<128x128xf32>
      %c0_16 = arith.constant 0 : index
      %c0_17 = arith.constant 0 : index
      %21 = vector.load %arg6[%c0_16, %c0_17] : memref<128x128xf32, #tpu.memory_space<vmem>>, vector<128x128xf32>
      tpu.vector_store %arg6[%c0_16, %c0_17], %20 {strides = array<i32>} : memref<128x128xf32, #tpu.memory_space<vmem>>, vector<128x128xf32>,
    } else {
    }
    return
  }
  func.func @transform_0(%arg0: i32, %arg1: i32, %arg2: i32) -> (i32, i32) {
    %c0_i32 = arith.constant 0 : i32
    return %arg0, %arg2 : i32, i32
  }
  func.func @transform_1(%arg0: i32, %arg1: i32, %arg2: i32) -> (i32, i32) {
    %c0_i32 = arith.constant 0 : i32
    return %arg2, %arg1 : i32, i32
  }
  func.func @transform_2(%arg0: i32, %arg1: i32, %arg2: i32) -> (i32, i32) {
    %c0_i32 = arith.constant 0 : i32
    %c0_i32_0 = arith.constant 0 : i32
    return %c0_i32, %arg1 : i32, i32
  }
  func.func @transform_3(%arg0: i32, %arg1: i32, %arg2: i32) -> (i32, i32) {
    %c0_i32 = arith.constant 0 : i32
    return %arg0, %arg1 : i32, i32
  }
}

module attributes {stable_mosaic.version = 11 : i64} {
  func.func @_conv_mm_kernel(%arg0: i32, %arg1: i32, %arg2: i32, %arg3: memref<32x1024xbf16, #tpu.memory_space<vmem>>, %arg4: memref<1024x128xbf16, #tpu.memory_space<vmem>>, %arg5: memref<1x128xf32, #tpu.memory_space<vmem>>, %arg6: memref<32x128xf32, #tpu.memory_space<vmem>>, %arg7: memref<32x128xf32, #tpu.memory_space<vmem>>) attributes {dimension_semantics = [#tpu.dimension_semantics<parallel>, #tpu.dimension_semantics<parallel>, #tpu.dimension_semantics<arbitrary>], iteration_bounds = array<i64: 1, 1, 2>, scalar_prefetch = 0 : i64, scratch_operands = 1 : i64, tpu.core_type = #tpu.core_type<tc>, window_params = [{transform_indices = @transform_0, window_bounds = array<i64: 32, 1024>}, {transform_indices = @transform_1, window_bounds = array<i64: 1024, 128>}, {transform_indices = @transform_2, window_bounds = array<i64: 1, 128>}, {transform_indices = @transform_3, window_bounds = array<i64: 32, 128>}]} {
    %c0_i32 = arith.constant 0 : i32
    %0 = arith.cmpi eq, %arg2, %c0_i32 : i32
    %1 = arith.extui %0 : i1 to i32
    %c0_i32_0 = arith.constant 0 : i32
    %2 = arith.cmpi ne, %1, %c0_i32_0 : i32
    scf.if %2 {
      %cst_9 = arith.constant 0.000000e+00 : f32
      %12 = vector.broadcast %cst_9 : f32 to vector<32x128xf32>
      %c0_10 = arith.constant 0 : index
      %c0_11 = arith.constant 0 : index
      %13 = vector.load %arg7[%c0_10, %c0_11] : memref<32x128xf32, #tpu.memory_space<vmem>>, vector<32x128xf32>
      tpu.vector_store %arg7[%c0_10, %c0_11], %12 {strides = array<i32>} : memref<32x128xf32, #tpu.memory_space<vmem>>, vector<32x128xf32>,
    } else {
    }
    %c0 = arith.constant 0 : index
    %c0_1 = arith.constant 0 : index
    %3 = vector.load %arg7[%c0, %c0_1] : memref<32x128xf32, #tpu.memory_space<vmem>>, vector<32x128xf32>
    %c0_2 = arith.constant 0 : index
    %c0_3 = arith.constant 0 : index
    %4 = vector.load %arg3[%c0_2, %c0_3] : memref<32x1024xbf16, #tpu.memory_space<vmem>>, vector<32x1024xbf16>
    %c0_4 = arith.constant 0 : index
    %c0_5 = arith.constant 0 : index
    %5 = vector.load %arg4[%c0_4, %c0_5] : memref<1024x128xbf16, #tpu.memory_space<vmem>>, vector<1024x128xbf16>
    %cst = arith.constant dense<0.000000e+00> : vector<32x128xf32>
    %6 = tpu.matmul %4, %5, %cst {dimension_numbers = #tpu.dot_dimension_numbers<[1], [0], [0], [1], [0, 0, 1, 1], [], []>} : vector<32x1024xbf16>, vector<1024x128xbf16>, vector<32x128xf32> -> vector<32x128xf32>
    %7 = arith.addf %3, %6 : vector<32x128xf32>
    %c0_6 = arith.constant 0 : index
    %c0_7 = arith.constant 0 : index
    %8 = vector.load %arg7[%c0_6, %c0_7] : memref<32x128xf32, #tpu.memory_space<vmem>>, vector<32x128xf32>
    tpu.vector_store %arg7[%c0_6, %c0_7], %7 {strides = array<i32>} : memref<32x128xf32, #tpu.memory_space<vmem>>, vector<32x128xf32>,
    %c1_i32 = arith.constant 1 : i32
    %9 = arith.cmpi eq, %arg2, %c1_i32 : i32
    %10 = arith.extui %9 : i1 to i32
    %c0_i32_8 = arith.constant 0 : i32
    %11 = arith.cmpi ne, %10, %c0_i32_8 : i32
    scf.if %11 {
      %c0_9 = arith.constant 0 : index
      %c0_10 = arith.constant 0 : index
      %12 = vector.load %arg7[%c0_9, %c0_10] : memref<32x128xf32, #tpu.memory_space<vmem>>, vector<32x128xf32>
      %c0_11 = arith.constant 0 : index
      %c0_12 = arith.constant 0 : index
      %13 = vector.load %arg5[%c0_11, %c0_12] : memref<1x128xf32, #tpu.memory_space<vmem>>, vector<1x128xf32>
      %14 = vector.broadcast %13 : vector<1x128xf32> to vector<32x128xf32>
      %15 = arith.addf %12, %14 : vector<32x128xf32>
      %cst_13 = arith.constant 0.000000e+00 : f32
      %16 = vector.broadcast %cst_13 : f32 to vector<32x128xf32>
      %17 = arith.cmpf oge, %15, %16 : vector<32x128xf32>
      %cst_14 = arith.constant 2.000000e-01 : f32
      %18 = vector.broadcast %cst_14 : f32 to vector<32x128xf32>
      %19 = arith.mulf %18, %15 : vector<32x128xf32>
      %20 = arith.select %17, %15, %19 : vector<32x128xi1>, vector<32x128xf32>
      %c0_15 = arith.constant 0 : index
      %c0_16 = arith.constant 0 : index
      %21 = vector.load %arg6[%c0_15, %c0_16] : memref<32x128xf32, #tpu.memory_space<vmem>>, vector<32x128xf32>
      tpu.vector_store %arg6[%c0_15, %c0_16], %20 {strides = array<i32>} : memref<32x128xf32, #tpu.memory_space<vmem>>, vector<32x128xf32>,
    } else {
    }
    return
  }
  func.func @transform_0(%arg0: i32, %arg1: i32, %arg2: i32) -> (i32, i32) {
    %c0_i32 = arith.constant 0 : i32
    return %arg0, %arg2 : i32, i32
  }
  func.func @transform_1(%arg0: i32, %arg1: i32, %arg2: i32) -> (i32, i32) {
    %c0_i32 = arith.constant 0 : i32
    return %arg2, %arg1 : i32, i32
  }
  func.func @transform_2(%arg0: i32, %arg1: i32, %arg2: i32) -> (i32, i32) {
    %c0_i32 = arith.constant 0 : i32
    %c0_i32_0 = arith.constant 0 : i32
    return %c0_i32, %arg1 : i32, i32
  }
  func.func @transform_3(%arg0: i32, %arg1: i32, %arg2: i32) -> (i32, i32) {
    %c0_i32 = arith.constant 0 : i32
    return %arg0, %arg1 : i32, i32
  }
}

module attributes {stable_mosaic.version = 11 : i64} {
  func.func @_conv_mm_kernel(%arg0: i32, %arg1: i32, %arg2: i32, %arg3: memref<8x1024xbf16, #tpu.memory_space<vmem>>, %arg4: memref<1024x128xbf16, #tpu.memory_space<vmem>>, %arg5: memref<1x128xf32, #tpu.memory_space<vmem>>, %arg6: memref<8x128xf32, #tpu.memory_space<vmem>>, %arg7: memref<8x128xf32, #tpu.memory_space<vmem>>) attributes {dimension_semantics = [#tpu.dimension_semantics<parallel>, #tpu.dimension_semantics<parallel>, #tpu.dimension_semantics<arbitrary>], iteration_bounds = array<i64: 1, 1, 2>, scalar_prefetch = 0 : i64, scratch_operands = 1 : i64, tpu.core_type = #tpu.core_type<tc>, window_params = [{transform_indices = @transform_0, window_bounds = array<i64: 8, 1024>}, {transform_indices = @transform_1, window_bounds = array<i64: 1024, 128>}, {transform_indices = @transform_2, window_bounds = array<i64: 1, 128>}, {transform_indices = @transform_3, window_bounds = array<i64: 8, 128>}]} {
    %c0_i32 = arith.constant 0 : i32
    %0 = arith.cmpi eq, %arg2, %c0_i32 : i32
    %1 = arith.extui %0 : i1 to i32
    %c0_i32_0 = arith.constant 0 : i32
    %2 = arith.cmpi ne, %1, %c0_i32_0 : i32
    scf.if %2 {
      %cst_9 = arith.constant 0.000000e+00 : f32
      %12 = vector.broadcast %cst_9 : f32 to vector<8x128xf32>
      %c0_10 = arith.constant 0 : index
      %c0_11 = arith.constant 0 : index
      %13 = vector.load %arg7[%c0_10, %c0_11] : memref<8x128xf32, #tpu.memory_space<vmem>>, vector<8x128xf32>
      tpu.vector_store %arg7[%c0_10, %c0_11], %12 {strides = array<i32>} : memref<8x128xf32, #tpu.memory_space<vmem>>, vector<8x128xf32>,
    } else {
    }
    %c0 = arith.constant 0 : index
    %c0_1 = arith.constant 0 : index
    %3 = vector.load %arg7[%c0, %c0_1] : memref<8x128xf32, #tpu.memory_space<vmem>>, vector<8x128xf32>
    %c0_2 = arith.constant 0 : index
    %c0_3 = arith.constant 0 : index
    %4 = vector.load %arg3[%c0_2, %c0_3] : memref<8x1024xbf16, #tpu.memory_space<vmem>>, vector<8x1024xbf16>
    %c0_4 = arith.constant 0 : index
    %c0_5 = arith.constant 0 : index
    %5 = vector.load %arg4[%c0_4, %c0_5] : memref<1024x128xbf16, #tpu.memory_space<vmem>>, vector<1024x128xbf16>
    %cst = arith.constant dense<0.000000e+00> : vector<8x128xf32>
    %6 = tpu.matmul %4, %5, %cst {dimension_numbers = #tpu.dot_dimension_numbers<[1], [0], [0], [1], [0, 0, 1, 1], [], []>} : vector<8x1024xbf16>, vector<1024x128xbf16>, vector<8x128xf32> -> vector<8x128xf32>
    %7 = arith.addf %3, %6 : vector<8x128xf32>
    %c0_6 = arith.constant 0 : index
    %c0_7 = arith.constant 0 : index
    %8 = vector.load %arg7[%c0_6, %c0_7] : memref<8x128xf32, #tpu.memory_space<vmem>>, vector<8x128xf32>
    tpu.vector_store %arg7[%c0_6, %c0_7], %7 {strides = array<i32>} : memref<8x128xf32, #tpu.memory_space<vmem>>, vector<8x128xf32>,
    %c1_i32 = arith.constant 1 : i32
    %9 = arith.cmpi eq, %arg2, %c1_i32 : i32
    %10 = arith.extui %9 : i1 to i32
    %c0_i32_8 = arith.constant 0 : i32
    %11 = arith.cmpi ne, %10, %c0_i32_8 : i32
    scf.if %11 {
      %c0_9 = arith.constant 0 : index
      %c0_10 = arith.constant 0 : index
      %12 = vector.load %arg7[%c0_9, %c0_10] : memref<8x128xf32, #tpu.memory_space<vmem>>, vector<8x128xf32>
      %c0_11 = arith.constant 0 : index
      %c0_12 = arith.constant 0 : index
      %13 = vector.load %arg5[%c0_11, %c0_12] : memref<1x128xf32, #tpu.memory_space<vmem>>, vector<1x128xf32>
      %14 = vector.broadcast %13 : vector<1x128xf32> to vector<8x128xf32>
      %15 = arith.addf %12, %14 : vector<8x128xf32>
      %cst_13 = arith.constant 0.000000e+00 : f32
      %16 = vector.broadcast %cst_13 : f32 to vector<8x128xf32>
      %17 = arith.subf %16, %15 : vector<8x128xf32>
      %18 = math.exp %17 : vector<8x128xf32>
      %cst_14 = arith.constant 1.000000e+00 : f32
      %19 = vector.broadcast %cst_14 : f32 to vector<8x128xf32>
      %20 = arith.addf %19, %18 : vector<8x128xf32>
      %cst_15 = arith.constant 1.000000e+00 : f32
      %21 = vector.broadcast %cst_15 : f32 to vector<8x128xf32>
      %22 = arith.divf %21, %20 : vector<8x128xf32>
      %c0_16 = arith.constant 0 : index
      %c0_17 = arith.constant 0 : index
      %23 = vector.load %arg6[%c0_16, %c0_17] : memref<8x128xf32, #tpu.memory_space<vmem>>, vector<8x128xf32>
      tpu.vector_store %arg6[%c0_16, %c0_17], %22 {strides = array<i32>} : memref<8x128xf32, #tpu.memory_space<vmem>>, vector<8x128xf32>,
    } else {
    }
    return
  }
  func.func @transform_0(%arg0: i32, %arg1: i32, %arg2: i32) -> (i32, i32) {
    %c0_i32 = arith.constant 0 : i32
    return %arg0, %arg2 : i32, i32
  }
  func.func @transform_1(%arg0: i32, %arg1: i32, %arg2: i32) -> (i32, i32) {
    %c0_i32 = arith.constant 0 : i32
    return %arg2, %arg1 : i32, i32
  }
  func.func @transform_2(%arg0: i32, %arg1: i32, %arg2: i32) -> (i32, i32) {
    %c0_i32 = arith.constant 0 : i32
    %c0_i32_0 = arith.constant 0 : i32
    return %c0_i32, %arg1 : i32, i32
  }
  func.func @transform_3(%arg0: i32, %arg1: i32, %arg2: i32) -> (i32, i32) {
    %c0_i32 = arith.constant 0 : i32
    return %arg0, %arg1 : i32, i32
  }
}

</mosaic_0001>

<llo_original>
// kernel: _lambda_.3
$region0: #{_lambda_.3}
  #allocation0 [shape = 'u32[]', space=smem, size = 0x4, offset = 0x4, fixed_abs, tag = 'smem constant byte address 0x4 - core index']
  #allocation1 [shape = 'u32[144,128]{1,0:T(1,128)}', space=vmem, size = 0x12000, scoped, tag = 'internal scratch']
  #allocation2 [shape = 'f32[128,128]{1,0:T(8,128)}', space=vmem, size = 0x10000, scoped, tag = 'scratch operand']
  %s0 = inlined_call_operand.vmem [shape: bf16[128,128], index: 0, kind: input, shape index: {}]
  %s1 = inlined_call_operand.vmem [shape: bf16[128,128], index: 1, kind: input, shape index: {}]
  %s2 = inlined_call_operand.vmem [shape: f32[1,128], index: 2, kind: input, shape index: {}]
  %s3 = inlined_call_operand.vmem [shape: f32[128,128], index: 3, kind: output, shape index: {}]
  %s4 = sld [smem:[#allocation0]]
  $region30: #{_lambda_.3} parent=0
    _
  %s6 = ssub.s32 1, %s4
  %s7 = scalar_select 0, %s6, %s4
  // Predicated region
  $region2: #{_lambda_.3} parent=0 // pred_check
    _
  $region3: #{_lambda_.3} parent=0 // pred_check_branch
    %9 = sbr.rel (0) target = $region5
  $region4: #{_lambda_.3} parent=0 // pred_region
    _
  $region5: #{_lambda_.3} parent=0 // pred_fallthru
    _
  // Predicated region
  $region6: #{_lambda_.3} parent=0 // pred_check
    _
  $region7: #{_lambda_.3} parent=0 // pred_check_branch
    %11 = sbr.rel (0) target = $region9
  $region8: #{_lambda_.3} parent=0 // pred_region
    _
  $region9: #{_lambda_.3} parent=0 // pred_fallthru
    _
  // Predicated region
  $region10: #{_lambda_.3} parent=0 // pred_check
    _
  $region11: #{_lambda_.3} parent=0 // pred_check_branch
    %13 = sbr.rel (0) target = $region13
  $region12: #{_lambda_.3} parent=0 // pred_region
    _
  $region13: #{_lambda_.3} parent=0 // pred_fallthru
    _
  %p15 = scmp.eq.s32.totalorder 0, 0
  // Predicated region
  $region14: #{_lambda_.3} parent=0 // pred_check
    %p16 = pneg %p15
  $region15: #{_lambda_.3} parent=0 // pred_check_branch
    %18 = sbr.rel (%p16) target = $region17
  $region16: #{_lambda_.3} parent=0 // pred_region
    %19 = vst [vmem:[#allocation2] sm:$0xff] 0.0
    %20 = vst [vmem:[#allocation2 + $0x8] sm:$0xff] 0.0
    %21 = vst [vmem:[#allocation2 + $0x10] sm:$0xff] 0.0
    %22 = vst [vmem:[#allocation2 + $0x18] sm:$0xff] 0.0
    %23 = vst [vmem:[#allocation2 + $0x20] sm:$0xff] 0.0
    %24 = vst [vmem:[#allocation2 + $0x28] sm:$0xff] 0.0
    %25 = vst [vmem:[#allocation2 + $0x30] sm:$0xff] 0.0
    %26 = vst [vmem:[#allocation2 + $0x38] sm:$0xff] 0.0
    %27 = vst [vmem:[#allocation2 + $0x40] sm:$0xff] 0.0
    %28 = vst [vmem:[#allocation2 + $0x48] sm:$0xff] 0.0
    %29 = vst [vmem:[#allocation2 + $0x50] sm:$0xff] 0.0
    %30 = vst [vmem:[#allocation2 + $0x58] sm:$0xff] 0.0
    %31 = vst [vmem:[#allocation2 + $0x60] sm:$0xff] 0.0
    %32 = vst [vmem:[#allocation2 + $0x68] sm:$0xff] 0.0
    %33 = vst [vmem:[#allocation2 + $0x70] sm:$0xff] 0.0
    %34 = vst [vmem:[#allocation2 + $0x78] sm:$0xff] 0.0
  $region17: #{_lambda_.3} parent=0 // pred_fallthru
    _
  %v35 = vld [vmem:[#allocation2] sm:$0xff]
  %v36 = vld [vmem:[#allocation2 + $0x8] sm:$0xff]
  %v37 = vld [vmem:[#allocation2 + $0x10] sm:$0xff]
  %v38 = vld [vmem:[#allocation2 + $0x18] sm:$0xff]
  %v39 = vld [vmem:[#allocation2 + $0x20] sm:$0xff]
  %v40 = vld [vmem:[#allocation2 + $0x28] sm:$0xff]
  %v41 = vld [vmem:[#allocation2 + $0x30] sm:$0xff]
  %v42 = vld [vmem:[#allocation2 + $0x38] sm:$0xff]
  %v43 = vld [vmem:[#allocation2 + $0x40] sm:$0xff]
  %v44 = vld [vmem:[#allocation2 + $0x48] sm:$0xff]
  %v45 = vld [vmem:[#allocation2 + $0x50] sm:$0xff]
  %v46 = vld [vmem:[#allocation2 + $0x58] sm:$0xff]
  %v47 = vld [vmem:[#allocation2 + $0x60] sm:$0xff]
  %v48 = vld [vmem:[#allocation2 + $0x68] sm:$0xff]
  %v49 = vld [vmem:[#allocation2 + $0x70] sm:$0xff]
  %v50 = vld [vmem:[#allocation2 + $0x78] sm:$0xff]
  %v51 = vld [vmem:[%s0] sm:$0xf]
  %v52 = vld [vmem:[%s0 + $0x4] sm:$0xf]
  %v53 = vld [vmem:[%s0 + $0x8] sm:$0xf]
  %v54 = vld [vmem:[%s0 + $0xc] sm:$0xf]
  %v55 = vld [vmem:[%s0 + $0x10] sm:$0xf]
  %v56 = vld [vmem:[%s0 + $0x14] sm:$0xf]
  %v57 = vld [vmem:[%s0 + $0x18] sm:$0xf]
  %v58 = vld [vmem:[%s0 + $0x1c] sm:$0xf]
  %v59 = vld [vmem:[%s0 + $0x20] sm:$0xf]
  %v60 = vld [vmem:[%s0 + $0x24] sm:$0xf]
  %v61 = vld [vmem:[%s0 + $0x28] sm:$0xf]
  %v62 = vld [vmem:[%s0 + $0x2c] sm:$0xf]
  %v63 = vld [vmem:[%s0 + $0x30] sm:$0xf]
  %v64 = vld [vmem:[%s0 + $0x34] sm:$0xf]
  %v65 = vld [vmem:[%s0 + $0x38] sm:$0xf]
  %v66 = vld [vmem:[%s0 + $0x3c] sm:$0xf]
  %v67 = vld [vmem:[%s1] sm:$0xf]
  %v68 = vld [vmem:[%s1 + $0x4] sm:$0xf]
  %v69 = vld [vmem:[%s1 + $0x8] sm:$0xf]
  %v70 = vld [vmem:[%s1 + $0xc] sm:$0xf]
  %v71 = vld [vmem:[%s1 + $0x10] sm:$0xf]
  %v72 = vld [vmem:[%s1 + $0x14] sm:$0xf]
  %v73 = vld [vmem:[%s1 + $0x18] sm:$0xf]
  %v74 = vld [vmem:[%s1 + $0x1c] sm:$0xf]
  %v75 = vld [vmem:[%s1 + $0x20] sm:$0xf]
  %v76 = vld [vmem:[%s1 + $0x24] sm:$0xf]
  %v77 = vld [vmem:[%s1 + $0x28] sm:$0xf]
  %v78 = vld [vmem:[%s1 + $0x2c] sm:$0xf]
  %v79 = vld [vmem:[%s1 + $0x30] sm:$0xf]
  %v80 = vld [vmem:[%s1 + $0x34] sm:$0xf]
  %v81 = vld [vmem:[%s1 + $0x38] sm:$0xf]
  %v82 = vld [vmem:[%s1 + $0x3c] sm:$0xf]
  %v99 = vunpack.c.l.b16 %v51
  %v100 = vunpack.c.l.b16 %v52
  %v101 = vunpack.c.l.b16 %v53
  %v102 = vunpack.c.l.b16 %v54
  %v103 = vunpack.c.l.b16 %v55
  %v104 = vunpack.c.l.b16 %v56
  %v105 = vunpack.c.l.b16 %v57
  %v106 = vunpack.c.l.b16 %v58
  %v107 = vunpack.c.l.b16 %v59
  %v108 = vunpack.c.l.b16 %v60
  %v109 = vunpack.c.l.b16 %v61
  %v110 = vunpack.c.l.b16 %v62
  %v111 = vunpack.c.l.b16 %v63
  %v112 = vunpack.c.l.b16 %v64
  %v113 = vunpack.c.l.b16 %v65
  %v114 = vunpack.c.l.b16 %v66
  %v115 = vpack.c.b16 %v100, %v99
  %v116 = vpack.c.b16 %v102, %v101
  %v117 = vpack.c.b16 %v104, %v103
  %v118 = vpack.c.b16 %v106, %v105
  %v119 = vpack.c.b16 %v108, %v107
  %v120 = vpack.c.b16 %v110, %v109
  %v121 = vpack.c.b16 %v112, %v111
  %v122 = vpack.c.b16 %v114, %v113
  %v147 = vunpack.c.l.b16 %v67
  %v148 = vunpack.c.l.b16 %v68
  %v149 = vunpack.c.l.b16 %v69
  %v150 = vunpack.c.l.b16 %v70
  %v151 = vunpack.c.l.b16 %v71
  %v152 = vunpack.c.l.b16 %v72
  %v153 = vunpack.c.l.b16 %v73
  %v154 = vunpack.c.l.b16 %v74
  %v155 = vunpack.c.l.b16 %v75
  %v156 = vunpack.c.l.b16 %v76
  %v157 = vunpack.c.l.b16 %v77
  %v158 = vunpack.c.l.b16 %v78
  %v159 = vunpack.c.l.b16 %v79
  %v160 = vunpack.c.l.b16 %v80
  %v161 = vunpack.c.l.b16 %v81
  %v162 = vunpack.c.l.b16 %v82
  %v163 = vpack.c.b16 %v148, %v147
  %v164 = vpack.c.b16 %v150, %v149
  %v165 = vpack.c.b16 %v152, %v151
  %v166 = vpack.c.b16 %v154, %v153
  %v167 = vpack.c.b16 %v156, %v155
  %v168 = vpack.c.b16 %v158, %v157
  %v169 = vpack.c.b16 %v160, %v159
  %v170 = vpack.c.b16 %v162, %v161
  %179 = vmatprep.subr.bf16.mxu0 0
  %180 = vmatpush1.bf16.msra.mxu0 %v170
  %181 = vmatprep.subr.bf16.mxu0 0
  %182 = vmatpush1.bf16.msra.mxu0 %v169
  %183 = vmatprep.subr.bf16.mxu0 0
  %184 = vmatpush1.bf16.msra.mxu0 %v168
  %185 = vmatprep.subr.bf16.mxu0 0
  %186 = vmatpush1.bf16.msra.mxu0 %v167
  %187 = vmatprep.subr.bf16.mxu0 0
  %188 = vmatpush1.bf16.msra.mxu0 %v166
  %189 = vmatprep.subr.bf16.mxu0 0
  %190 = vmatpush1.bf16.msra.mxu0 %v165
  %191 = vmatprep.subr.bf16.mxu0 0
  %192 = vmatpush1.bf16.msra.mxu0 %v164
  %193 = vmatprep.subr.bf16.mxu0 0
  %194 = vmatpush1.bf16.msra.mxu0 %v163
  %195 = vmatprep.subr.bf16.mxu0 0
  %196 = vmatpush2.bf16.msra.mxu0 0
  %197 = vmatprep.subr.bf16.mxu0 0
  %198 = vmatpush2.bf16.msra.mxu0 0
  %199 = vmatprep.subr.bf16.mxu0 0
  %200 = vmatpush2.bf16.msra.mxu0 0
  %201 = vmatprep.subr.bf16.mxu0 0
  %202 = vmatpush2.bf16.msra.mxu0 0
  %203 = vmatprep.subr.bf16.mxu0 0
  %204 = vmatpush2.bf16.msra.mxu0 0
  %205 = vmatprep.subr.bf16.mxu0 0
  %206 = vmatpush2.bf16.msra.mxu0 0
  %207 = vmatprep.subr.bf16.mxu0 0
  %208 = vmatpush2.bf16.msra.mxu0 0
  %209 = vmatprep.subr.bf16.mxu0 0
  %210 = vmatpush2.bf16.msra.mxu0 0
  %211 = vmatprep.mubr.bf16.mxu0 0
  %212 = vmatmul.mubr.bf16.gmra.mxu0 %v115
  %v213 = vpop.f32.mrf.mxu0
  %v214 = vadd.f32 0.0, %v213
  %v215 = vpop.f32.mrf.mxu0
  %v216 = vpop.f32.mrf.mxu0
  %v217 = vadd.f32 0.0, %v216
  %v218 = vpop.f32.mrf.mxu0
  %219 = vmatprep.mubr.bf16.mxu0 0
  %220 = vmatmul.mubr.bf16.gmra.mxu0 %v116
  %v221 = vpop.f32.mrf.mxu0
  %v222 = vadd.f32 0.0, %v221
  %v223 = vpop.f32.mrf.mxu0
  %v224 = vpop.f32.mrf.mxu0
  %v225 = vadd.f32 0.0, %v224
  %v226 = vpop.f32.mrf.mxu0
  %227 = vmatprep.mubr.bf16.mxu0 0
  %228 = vmatmul.mubr.bf16.gmra.mxu0 %v117
  %v229 = vpop.f32.mrf.mxu0
  %v230 = vadd.f32 0.0, %v229
  %v231 = vpop.f32.mrf.mxu0
  %v232 = vpop.f32.mrf.mxu0
  %v233 = vadd.f32 0.0, %v232
  %v234 = vpop.f32.mrf.mxu0
  %235 = vmatprep.mubr.bf16.mxu0 0
  %236 = vmatmul.mubr.bf16.gmra.mxu0 %v118
  %v237 = vpop.f32.mrf.mxu0
  %v238 = vadd.f32 0.0, %v237
  %v239 = vpop.f32.mrf.mxu0
  %v240 = vpop.f32.mrf.mxu0
  %v241 = vadd.f32 0.0, %v240
  %v242 = vpop.f32.mrf.mxu0
  %243 = vmatprep.mubr.bf16.mxu0 0
  %244 = vmatmul.mubr.bf16.gmra.mxu0 %v119
  %v245 = vpop.f32.mrf.mxu0
  %v246 = vadd.f32 0.0, %v245
  %v247 = vpop.f32.mrf.mxu0
  %v248 = vpop.f32.mrf.mxu0
  %v249 = vadd.f32 0.0, %v248
  %v250 = vpop.f32.mrf.mxu0
  %251 = vmatprep.mubr.bf16.mxu0 0
  %252 = vmatmul.mubr.bf16.gmra.mxu0 %v120
  %v253 = vpop.f32.mrf.mxu0
  %v254 = vadd.f32 0.0, %v253
  %v255 = vpop.f32.mrf.mxu0
  %v256 = vpop.f32.mrf.mxu0
  %v257 = vadd.f32 0.0, %v256
  %v258 = vpop.f32.mrf.mxu0
  %259 = vmatprep.mubr.bf16.mxu0 0
  %260 = vmatmul.mubr.bf16.gmra.mxu0 %v121
  %v261 = vpop.f32.mrf.mxu0
  %v262 = vadd.f32 0.0, %v261
  %v263 = vpop.f32.mrf.mxu0
  %v264 = vpop.f32.mrf.mxu0
  %v265 = vadd.f32 0.0, %v264
  %v266 = vpop.f32.mrf.mxu0
  %267 = vmatprep.mubr.bf16.mxu0 0
  %268 = vmatmul.mubr.bf16.gmra.mxu0 %v122
  %v269 = vpop.f32.mrf.mxu0
  %v270 = vadd.f32 0.0, %v269
  %v271 = vpop.f32.mrf.mxu0
  %v272 = vpop.f32.mrf.mxu0
  %v273 = vadd.f32 0.0, %v272
  %v274 = vpop.f32.mrf.mxu0
  %275 = vdwg.mxu0
  %v276 = vadd.f32 %v35, %v214
  %v277 = vadd.f32 %v36, %v217
  %v278 = vadd.f32 %v37, %v222
  %v279 = vadd.f32 %v38, %v225
  %v280 = vadd.f32 %v39, %v230
  %v281 = vadd.f32 %v40, %v233
  %v282 = vadd.f32 %v41, %v238
  %v283 = vadd.f32 %v42, %v241
  %v284 = vadd.f32 %v43, %v246
  %v285 = vadd.f32 %v44, %v249
  %v286 = vadd.f32 %v45, %v254
  %v287 = vadd.f32 %v46, %v257
  %v288 = vadd.f32 %v47, %v262
  %v289 = vadd.f32 %v48, %v265
  %v290 = vadd.f32 %v49, %v270
  %v291 = vadd.f32 %v50, %v273
  %292 = vst [vmem:[#allocation2] sm:$0xff] %v276
  %293 = vst [vmem:[#allocation2 + $0x8] sm:$0xff] %v277
  %294 = vst [vmem:[#allocation2 + $0x10] sm:$0xff] %v278
  %295 = vst [vmem:[#allocation2 + $0x18] sm:$0xff] %v279
  %296 = vst [vmem:[#allocation2 + $0x20] sm:$0xff] %v280
  %297 = vst [vmem:[#allocation2 + $0x28] sm:$0xff] %v281
  %298 = vst [vmem:[#allocation2 + $0x30] sm:$0xff] %v282
  %299 = vst [vmem:[#allocation2 + $0x38] sm:$0xff] %v283
  %300 = vst [vmem:[#allocation2 + $0x40] sm:$0xff] %v284
  %301 = vst [vmem:[#allocation2 + $0x48] sm:$0xff] %v285
  %302 = vst [vmem:[#allocation2 + $0x50] sm:$0xff] %v286
  %303 = vst [vmem:[#allocation2 + $0x58] sm:$0xff] %v287
  %304 = vst [vmem:[#allocation2 + $0x60] sm:$0xff] %v288
  %305 = vst [vmem:[#allocation2 + $0x68] sm:$0xff] %v289
  %306 = vst [vmem:[#allocation2 + $0x70] sm:$0xff] %v290
  %307 = vst [vmem:[#allocation2 + $0x78] sm:$0xff] %v291
  // Predicated region
  $region18: #{_lambda_.3} parent=0 // pred_check
    %p308 = pneg %p15
  $region19: #{_lambda_.3} parent=0 // pred_check_branch
    %310 = sbr.rel (%p308) target = $region21
  $region20: #{_lambda_.3} parent=0 // pred_region
    %v311 = vld [vmem:[#allocation2] sm:$0xff]
    %v312 = vld [vmem:[#allocation2 + $0x8] sm:$0xff]
    %v313 = vld [vmem:[#allocation2 + $0x10] sm:$0xff]
    %v314 = vld [vmem:[#allocation2 + $0x18] sm:$0xff]
    %v315 = vld [vmem:[#allocation2 + $0x20] sm:$0xff]
    %v316 = vld [vmem:[#allocation2 + $0x28] sm:$0xff]
    %v317 = vld [vmem:[#allocation2 + $0x30] sm:$0xff]
    %v318 = vld [vmem:[#allocation2 + $0x38] sm:$0xff]
    %v319 = vld [vmem:[#allocation2 + $0x40] sm:$0xff]
    %v320 = vld [vmem:[#allocation2 + $0x48] sm:$0xff]
    %v321 = vld [vmem:[#allocation2 + $0x50] sm:$0xff]
    %v322 = vld [vmem:[#allocation2 + $0x58] sm:$0xff]
    %v323 = vld [vmem:[#allocation2 + $0x60] sm:$0xff]
    %v324 = vld [vmem:[#allocation2 + $0x68] sm:$0xff]
    %v325 = vld [vmem:[#allocation2 + $0x70] sm:$0xff]
    %v326 = vld [vmem:[#allocation2 + $0x78] sm:$0xff]
    %v327 = vld [vmem:[%s2] sm:$0x1]
    %v329 = vlaneseq
    %v330 = vshrl.u32 %v329, 7
    %v331 = vsub.s32 0, %v330
    %v332 = vrot.slane %v327, %v331
    %v334 = vadd.f32 %v311, %v332
    %v335 = vadd.f32 %v312, %v332
    %v336 = vadd.f32 %v313, %v332
    %v337 = vadd.f32 %v314, %v332
    %v338 = vadd.f32 %v315, %v332
    %v339 = vadd.f32 %v316, %v332
    %v340 = vadd.f32 %v317, %v332
    %v341 = vadd.f32 %v318, %v332
    %v342 = vadd.f32 %v319, %v332
    %v343 = vadd.f32 %v320, %v332
    %v344 = vadd.f32 %v321, %v332
    %v345 = vadd.f32 %v322, %v332
    %v346 = vadd.f32 %v323, %v332
    %v347 = vadd.f32 %v324, %v332
    %v348 = vadd.f32 %v325, %v332
    %v349 = vadd.f32 %v326, %v332
    %vm350 = vcmp.ge.f32.partialorder %v334, 0.0
    %vm351 = vcmp.ge.f32.partialorder %v335, 0.0
    %vm352 = vcmp.ge.f32.partialorder %v336, 0.0
    %vm353 = vcmp.ge.f32.partialorder %v337, 0.0
    %vm354 = vcmp.ge.f32.partialorder %v338, 0.0
    %vm355 = vcmp.ge.f32.partialorder %v339, 0.0
    %vm356 = vcmp.ge.f32.partialorder %v340, 0.0
    %vm357 = vcmp.ge.f32.partialorder %v341, 0.0
    %vm358 = vcmp.ge.f32.partialorder %v342, 0.0
    %vm359 = vcmp.ge.f32.partialorder %v343, 0.0
    %vm360 = vcmp.ge.f32.partialorder %v344, 0.0
    %vm361 = vcmp.ge.f32.partialorder %v345, 0.0
    %vm362 = vcmp.ge.f32.partialorder %v346, 0.0
    %vm363 = vcmp.ge.f32.partialorder %v347, 0.0
    %vm364 = vcmp.ge.f32.partialorder %v348, 0.0
    %vm365 = vcmp.ge.f32.partialorder %v349, 0.0
    %v366 = vmul.f32 %v334, 0.2
    %v367 = vmul.f32 %v335, 0.2
    %v368 = vmul.f32 %v336, 0.2
    %v369 = vmul.f32 %v337, 0.2
    %v370 = vmul.f32 %v338, 0.2
    %v371 = vmul.f32 %v339, 0.2
    %v372 = vmul.f32 %v340, 0.2
    %v373 = vmul.f32 %v341, 0.2
    %v374 = vmul.f32 %v342, 0.2
    %v375 = vmul.f32 %v343, 0.2
    %v376 = vmul.f32 %v344, 0.2
    %v377 = vmul.f32 %v345, 0.2
    %v378 = vmul.f32 %v346, 0.2
    %v379 = vmul.f32 %v347, 0.2
    %v380 = vmul.f32 %v348, 0.2
    %v381 = vmul.f32 %v349, 0.2
    %v382 = vsel %vm350, %v334, %v366
    %v383 = vsel %vm351, %v335, %v367
    %v384 = vsel %vm352, %v336, %v368
    %v385 = vsel %vm353, %v337, %v369
    %v386 = vsel %vm354, %v338, %v370
    %v387 = vsel %vm355, %v339, %v371
    %v388 = vsel %vm356, %v340, %v372
    %v389 = vsel %vm357, %v341, %v373
    %v390 = vsel %vm358, %v342, %v374
    %v391 = vsel %vm359, %v343, %v375
    %v392 = vsel %vm360, %v344, %v376
    %v393 = vsel %vm361, %v345, %v377
    %v394 = vsel %vm362, %v346, %v378
    %v395 = vsel %vm363, %v347, %v379
    %v396 = vsel %vm364, %v348, %v380
    %v397 = vsel %vm365, %v349, %v381
    %398 = vst [vmem:[%s3] sm:$0xff] %v382
    %399 = vst [vmem:[%s3 + $0x8] sm:$0xff] %v383
    %400 = vst [vmem:[%s3 + $0x10] sm:$0xff] %v384
    %401 = vst [vmem:[%s3 + $0x18] sm:$0xff] %v385
    %402 = vst [vmem:[%s3 + $0x20] sm:$0xff] %v386
    %403 = vst [vmem:[%s3 + $0x28] sm:$0xff] %v387
    %404 = vst [vmem:[%s3 + $0x30] sm:$0xff] %v388
    %405 = vst [vmem:[%s3 + $0x38] sm:$0xff] %v389
    %406 = vst [vmem:[%s3 + $0x40] sm:$0xff] %v390
    %407 = vst [vmem:[%s3 + $0x48] sm:$0xff] %v391
    %408 = vst [vmem:[%s3 + $0x50] sm:$0xff] %v392
    %409 = vst [vmem:[%s3 + $0x58] sm:$0xff] %v393
    %410 = vst [vmem:[%s3 + $0x60] sm:$0xff] %v394
    %411 = vst [vmem:[%s3 + $0x68] sm:$0xff] %v395
    %412 = vst [vmem:[%s3 + $0x70] sm:$0xff] %v396
    %413 = vst [vmem:[%s3 + $0x78] sm:$0xff] %v397
  $region21: #{_lambda_.3} parent=0 // pred_fallthru
    _
  // Predicated region
  $region22: #{_lambda_.3} parent=0 // pred_check
    _
  $region23: #{_lambda_.3} parent=0 // pred_check_branch
    %415 = sbr.rel (0) target = $region25
  $region24: #{_lambda_.3} parent=0 // pred_region
    _
  $region25: #{_lambda_.3} parent=0 // pred_fallthru
    _
  // Predicated region
  $region26: #{_lambda_.3} parent=0 // pred_check
    _
  $region27: #{_lambda_.3} parent=0 // pred_check_branch
    %417 = sbr.rel (0) target = $region29
  $region28: #{_lambda_.3} parent=0 // pred_region
    _
  $region29: #{_lambda_.3} parent=0 // pred_fallthru
    _

// kernel: _lambda_.4
$region0: #{_lambda_.4}
  #allocation0 [shape = 'u32[]', space=smem, size = 0x4, offset = 0x4, fixed_abs, tag = 'smem constant byte address 0x4 - core index']
  #allocation1 [shape = 'u32[144,128]{1,0:T(1,128)}', space=vmem, size = 0x12000, scoped, tag = 'internal scratch']
  #allocation2 [shape = 'f32[32,128]{1,0:T(8,128)}', space=vmem, size = 0x4000, scoped, tag = 'scratch operand']
  %s0 = inlined_call_operand.vmem [shape: bf16[32,2048], index: 0, kind: input, shape index: {}]
  %s1 = inlined_call_operand.vmem [shape: bf16[2048,128], index: 1, kind: input, shape index: {}]
  %s2 = inlined_call_operand.vmem [shape: f32[1,128], index: 2, kind: input, shape index: {}]
  %s3 = inlined_call_operand.vmem [shape: f32[32,128], index: 3, kind: output, shape index: {}]
  %s4 = sld [smem:[#allocation0]]
  $region76: #{_lambda_.4} parent=0
    _
  %s6 = ssub.s32 1, %s4
  %s7 = scalar_select 0, %s6, %s4
  $region1: #{_lambda_.4} parent=0
    #allocation3 [shape = 'u8[131072]{0}', space=vmem, size = 0x20000, scoped, tag = 'input window, operand 0']
    loop: start=0, step=1, limit=4
    $region2: #{_lambda_.4} parent=1 // loop_pre_header
      _
    $region3: #{_lambda_.4} parent=1 // loop_header
      %s9 = sphi 0, %s13
      %p10 = scmp.ge.s32.totalorder %s9, 4
      %s16 = sphi 0, %s35
      %s17 = sphi 0, %s31
      %s18 = sphi 0, %s27
      %s19 = sphi 0, %s16
      %s20 = sphi 0, %s17
      %s21 = sphi 0, %s18
      %s22 = sphi 0, %s19
      %s23 = sphi 0, %s20
      %s24 = sphi 0, %s21
      %s40 = sphi 0, %s42
      %s43 = sphi 0, %s40
      %s44 = sphi 0, %s43
      %s60 = sphi 0, %s44
      %s68 = sphi 0, %s70
      %s71 = sphi 0, %s68
      %s72 = sphi 0, %s71
      %s88 = sphi 0, %s72
      %s94 = sphi 0, %s96
      %s97 = sphi 0, %s94
      %s98 = sphi 0, %s97
      %s114 = sphi 0, %s98
      %s122 = sphi 0, %s124
      %s125 = sphi 0, %s122
      %s126 = sphi 0, %s125
      %s142 = sphi 0, %s126
    $region4: #{_lambda_.4} parent=1 // loop_header_branch
      %12 = sbr.rel (%p10) target = $region8
    $region5: #{_lambda_.4} parent=1 // loop_body
      %s14 = ssub.s32 %s9, 1
      %s15 = ssub.s32 %s9, 2
      %s25 = sadd.s32 1, %s18
      %p26 = scmp.ge.s32.totalorder %s25, 2
      %s27 = scalar_select %p26, 0, %s25
      %s28 = sadd.s32 1, %s17
      %s29 = scalar_select %p26, %s28, %s17
      %p30 = scmp.ge.s32.totalorder %s29, 1
      %s31 = scalar_select %p30, 0, %s29
      %s32 = sadd.s32 1, %s16
      %s33 = scalar_select %p30, %s32, %s16
      %p34 = scmp.ge.s32.totalorder %s33, 1
      %s35 = scalar_select %p34, 0, %s33
      %s36 = ssub.s32 %s16, %s35
      %s37 = ssub.s32 %s18, %s27
      %s38 = sor.u32 %s36, %s37
      %p39 = scmp.eq.s32.totalorder %s38, 0
      %s41 = sadd.s32 %s40, 1
      %s42 = scalar_select %p39, %s40, %s41
      %p45 = pneg %p39
      %p46 = scmp.eq.s32.totalorder %s9, 1
      %p47 = por %p45, %p46
      %p48 = scmp.ne.s32.totalorder %s40, %s43
      %p49 = scmp.eq.s32.totalorder %s9, 0
      %p50 = por %p48, %p49
      %p51 = scmp.ne.s32.totalorder %s40, %s43
      %p52 = scmp.eq.s32.totalorder %s14, 1
      %p53 = por %p51, %p52
      %p54 = scmp.ne.s32.totalorder %s43, %s44
      %p55 = scmp.eq.s32.totalorder %s14, 0
      %p56 = por %p54, %p55
      %p57 = scmp.ne.s32.totalorder %s43, %s44
      %p58 = scmp.eq.s32.totalorder %s15, 1
      %p59 = por %p57, %p58
      %p61 = scmp.ne.s32.totalorder %s44, %s60
      %p62 = scmp.eq.s32.totalorder %s15, 0
      %p63 = por %p61, %p62
      %s64 = ssub.s32 %s18, %s27
      %s65 = ssub.s32 %s17, %s31
      %s66 = sor.u32 %s64, %s65
      %p67 = scmp.eq.s32.totalorder %s66, 0
      %s69 = sadd.s32 %s68, 1
      %s70 = scalar_select %p67, %s68, %s69
      %p73 = pneg %p67
      %p74 = scmp.eq.s32.totalorder %s9, 1
      %p75 = por %p73, %p74
      %p76 = scmp.ne.s32.totalorder %s68, %s71
      %p77 = scmp.eq.s32.totalorder %s9, 0
      %p78 = por %p76, %p77
      %p79 = scmp.ne.s32.totalorder %s68, %s71
      %p80 = scmp.eq.s32.totalorder %s14, 1
      %p81 = por %p79, %p80
      %p82 = scmp.ne.s32.totalorder %s71, %s72
      %p83 = scmp.eq.s32.totalorder %s14, 0
      %p84 = por %p82, %p83
      %p85 = scmp.ne.s32.totalorder %s71, %s72
      %p86 = scmp.eq.s32.totalorder %s15, 1
      %p87 = por %p85, %p86
      %p89 = scmp.ne.s32.totalorder %s72, %s88
      %p90 = scmp.eq.s32.totalorder %s15, 0
      %p91 = por %p89, %p90
      %s92 = ssub.s32 %s17, %s31
      %p93 = scmp.eq.s32.totalorder %s92, 0
      %s95 = sadd.s32 %s94, 1
      %s96 = scalar_select %p93, %s94, %s95
      %p99 = pneg %p93
      %p100 = scmp.eq.s32.totalorder %s9, 1
      %p101 = por %p99, %p100
      %p102 = scmp.ne.s32.totalorder %s94, %s97
      %p103 = scmp.eq.s32.totalorder %s9, 0
      %p104 = por %p102, %p103
      %p105 = scmp.ne.s32.totalorder %s94, %s97
      %p106 = scmp.eq.s32.totalorder %s14, 1
      %p107 = por %p105, %p106
      %p108 = scmp.ne.s32.totalorder %s97, %s98
      %p109 = scmp.eq.s32.totalorder %s14, 0
      %p110 = por %p108, %p109
      %p111 = scmp.ne.s32.totalorder %s97, %s98
      %p112 = scmp.eq.s32.totalorder %s15, 1
      %p113 = por %p111, %p112
      %p115 = scmp.ne.s32.totalorder %s98, %s114
      %p116 = scmp.eq.s32.totalorder %s15, 0
      %p117 = por %p115, %p116
      %s118 = ssub.s32 %s16, %s35
      %s119 = ssub.s32 %s17, %s31
      %s120 = sor.u32 %s118, %s119
      %p121 = scmp.eq.s32.totalorder %s120, 0
      %s123 = sadd.s32 %s122, 1
      %s124 = scalar_select %p121, %s122, %s123
      %p127 = pneg %p121
      %p128 = scmp.eq.s32.totalorder %s9, 1
      %p129 = por %p127, %p128
      %p130 = scmp.ne.s32.totalorder %s122, %s125
      %p131 = scmp.eq.s32.totalorder %s9, 0
      %p132 = por %p130, %p131
      %p133 = scmp.ne.s32.totalorder %s122, %s125
      %p134 = scmp.eq.s32.totalorder %s14, 1
      %p135 = por %p133, %p134
      %p136 = scmp.ne.s32.totalorder %s125, %s126
      %p137 = scmp.eq.s32.totalorder %s14, 0
      %p138 = por %p136, %p137
      %p139 = scmp.ne.s32.totalorder %s125, %s126
      %p140 = scmp.eq.s32.totalorder %s15, 1
      %p141 = por %p139, %p140
      %p143 = scmp.ne.s32.totalorder %s126, %s142
      %p144 = scmp.eq.s32.totalorder %s15, 0
      %p145 = por %p143, %p144
      %p146 = scmp.le.s32.totalorder 1, %s9
      %p147 = scmp.lt.s32.totalorder %s9, 3
      %p148 = pnand %p146, %p147
      %p149 = pneg %p148
      // Predicated region
      $region9: #{_lambda_.4} parent=5 // pred_check
        _
      $region10: #{_lambda_.4} parent=5 // pred_check_branch
        %151 = sbr.rel (%p148) target = $region12
      $region11: #{_lambda_.4} parent=5 // pred_region
        %s152 = ssub.s32 %s9, 1
        // Predicated region
        $region13: #{_lambda_.4} parent=11 // pred_check
          %p153 = pneg %p110
        $region14: #{_lambda_.4} parent=11 // pred_check_branch
          %155 = sbr.rel (%p153) target = $region16
        $region15: #{_lambda_.4} parent=11 // pred_region
          %p156 = scmp.lt.s32.totalorder %s20, 0
          %s157 = scalar_select %p156, %s20, 0
          %s158 = scalar_lea.vmem %s2, %s157
        $region16: #{_lambda_.4} parent=11 // pred_fallthru
          _
      $region12: #{_lambda_.4} parent=5 // pred_fallthru
        _
      %p159 = scmp.lt.s32.totalorder %s9, 2
      // Predicated region
      $region17: #{_lambda_.4} parent=5 // pred_check
        %p160 = pneg %p159
      $region18: #{_lambda_.4} parent=5 // pred_check_branch
        %162 = sbr.rel (%p160) target = $region20
      $region19: #{_lambda_.4} parent=5 // pred_region
        // Predicated region
        $region21: #{_lambda_.4} parent=19 // pred_check
          %p163 = pneg %p50
        $region22: #{_lambda_.4} parent=19 // pred_check_branch
          %165 = sbr.rel (%p163) target = $region24
        $region23: #{_lambda_.4} parent=19 // pred_region
          %s166 = sand.u32 %s40, 1
          %s167 = sand.u32 %s40, 1
          %s168 = smul.addr %s167, 128
          %s169 = scalar_lea.vmem [#allocation3], %s168
          %s170 = smul.u32 4, %s16
          %s171 = smul.u32 8, %s18
          %s172 = smul.addr %s170, 16
          %s173 = sadd.s32 %s171, %s172
          %s174 = smul.addr %s173, 4
          %s175 = scalar_lea.vmem %s0, %s174
          // Predicated region
          $region25: #{_lambda_.4} parent=23 // pred_check
            _
          $region26: #{_lambda_.4} parent=23 // pred_check_branch
            %177 = sbr.rel (0) target = $region28
          $region27: #{_lambda_.4} parent=23 // pred_region
            // Predicated region
            $region29: #{_lambda_.4} parent=27 // pred_check
              _
            $region30: #{_lambda_.4} parent=27 // pred_check_branch
              %179 = sbr.rel (0) target = $region32
            $region31: #{_lambda_.4} parent=27 // pred_region
              loop: start=0, step=1, limit=1
              $region33: #{_lambda_.4} parent=31 // loop_pre_header
                _
              $region34: #{_lambda_.4} parent=31 // loop_header
                %s181 = sphi 0, %s185
                %p182 = scmp.ge.s32.totalorder %s181, 1
                %s186 = sphi %s175, %s175
                %s187 = sphi %s169, %s169
              $region35: #{_lambda_.4} parent=31 // loop_header_branch
                %184 = sbr.rel (%p182) target = $region39
              $region36: #{_lambda_.4} parent=31 // loop_body
                %v188 = vld [vmem:[%s186] sm:$0xff]
                %189 = vst [vmem:[%s187] sm:$0xff] %v188
                %v190 = vld [vmem:[%s186 + $0x8] sm:$0xff]
                %191 = vst [vmem:[%s187 + $0x8] sm:$0xff] %v190
                %v192 = vld [vmem:[%s186 + $0x10] sm:$0xff]
                %193 = vst [vmem:[%s187 + $0x10] sm:$0xff] %v192
                %v194 = vld [vmem:[%s186 + $0x18] sm:$0xff]
                %195 = vst [vmem:[%s187 + $0x18] sm:$0xff] %v194
                %v196 = vld [vmem:[%s186 + $0x40] sm:$0xff]
                %197 = vst [vmem:[%s187 + $0x20] sm:$0xff] %v196
                %v198 = vld [vmem:[%s186 + $0x48] sm:$0xff]
                %199 = vst [vmem:[%s187 + $0x28] sm:$0xff] %v198
                %v200 = vld [vmem:[%s186 + $0x50] sm:$0xff]
                %201 = vst [vmem:[%s187 + $0x30] sm:$0xff] %v200
                %v202 = vld [vmem:[%s186 + $0x58] sm:$0xff]
                %203 = vst [vmem:[%s187 + $0x38] sm:$0xff] %v202
                %v204 = vld [vmem:[%s186 + $0x80] sm:$0xff]
                %205 = vst [vmem:[%s187 + $0x40] sm:$0xff] %v204
                %v206 = vld [vmem:[%s186 + $0x88] sm:$0xff]
                %207 = vst [vmem:[%s187 + $0x48] sm:$0xff] %v206
                %v208 = vld [vmem:[%s186 + $0x90] sm:$0xff]
                %209 = vst [vmem:[%s187 + $0x50] sm:$0xff] %v208
                %v210 = vld [vmem:[%s186 + $0x98] sm:$0xff]
                %211 = vst [vmem:[%s187 + $0x58] sm:$0xff] %v210
                %v212 = vld [vmem:[%s186 + $0xc0] sm:$0xff]
                %213 = vst [vmem:[%s187 + $0x60] sm:$0xff] %v212
                %v214 = vld [vmem:[%s186 + $0xc8] sm:$0xff]
                %215 = vst [vmem:[%s187 + $0x68] sm:$0xff] %v214
                %v216 = vld [vmem:[%s186 + $0xd0] sm:$0xff]
                %217 = vst [vmem:[%s187 + $0x70] sm:$0xff] %v216
                %v218 = vld [vmem:[%s186 + $0xd8] sm:$0xff]
                %219 = vst [vmem:[%s187 + $0x78] sm:$0xff] %v218
              $region37: #{_lambda_.4} parent=31 // loop_footer
                %s185 = sadd.s32 1, %s181
              $region38: #{_lambda_.4} parent=31 // loop_footer_branch
                %180 = sbr.rel target = $region34
              $region39: #{_lambda_.4} parent=31 // loop_exit
                _
            $region32: #{_lambda_.4} parent=27 // pred_fallthru
              _
            // Predicated region
            $region40: #{_lambda_.4} parent=27 // pred_check
              _
            $region41: #{_lambda_.4} parent=27 // pred_check_branch
              %221 = sbr.rel target = $region43
            $region42: #{_lambda_.4} parent=27 // pred_region
              _
            $region43: #{_lambda_.4} parent=27 // pred_fallthru
              _
          $region28: #{_lambda_.4} parent=23 // pred_fallthru
            _
          %222 = vnop
        $region24: #{_lambda_.4} parent=19 // pred_fallthru
          _
        // Predicated region
        $region44: #{_lambda_.4} parent=19 // pred_check
          %p223 = pneg %p78
        $region45: #{_lambda_.4} parent=19 // pred_check_branch
          %225 = sbr.rel (%p223) target = $region47
        $region46: #{_lambda_.4} parent=19 // pred_region
          %s226 = smul.u32 128, %s18
          %p227 = scmp.lt.s32.totalorder %s226, 255
          %s228 = scalar_select %p227, %s226, 255
          %p229 = scmp.lt.s32.totalorder %s17, 0
          %s230 = scalar_select %p229, %s17, 0
          %s231 = sadd.s32 %s230, %s228
          %s232 = smul.addr %s231, 4
          %s233 = scalar_lea.vmem %s1, %s232
          %s234 = smul.u32 128, %s18
        $region47: #{_lambda_.4} parent=19 // pred_fallthru
          _
      $region20: #{_lambda_.4} parent=5 // pred_fallthru
        _
      %p235 = scmp.le.s32.totalorder 1, %s9
      %p236 = scmp.lt.s32.totalorder %s9, 3
      %p237 = pnand %p235, %p236
      %p238 = pneg %p237
      // Predicated region
      $region48: #{_lambda_.4} parent=5 // pred_check
        _
      $region49: #{_lambda_.4} parent=5 // pred_check_branch
        %240 = sbr.rel (%p237) target = $region51
      $region50: #{_lambda_.4} parent=5 // pred_region
        %s241 = ssub.s32 %s9, 1
        %s242 = sand.u32 %s43, 1
        %s243 = sand.u32 %s43, 1
        %s244 = smul.addr %s243, 128
        %s245 = scalar_lea.vmem [#allocation3], %s244
        // Predicated region
        $region52: #{_lambda_.4} parent=50 // pred_check
          %p246 = pneg %p56
        $region53: #{_lambda_.4} parent=50 // pred_check_branch
          %248 = sbr.rel (%p246) target = $region55
        $region54: #{_lambda_.4} parent=50 // pred_region
          _
        $region55: #{_lambda_.4} parent=50 // pred_fallthru
          _
        %s249 = sand.u32 %s43, 1
        %s250 = sand.u32 %s43, 1
        %s251 = smul.addr %s250, 128
        %s252 = scalar_lea.vmem [#allocation3], %s251
        %p253 = pneg %p56
        %p254 = pneg %p53
        %s255 = smul.u32 128, %s21
        %p256 = scmp.lt.s32.totalorder %s255, 255
        %s257 = scalar_select %p256, %s255, 255
        %p258 = scmp.lt.s32.totalorder %s20, 0
        %s259 = scalar_select %p258, %s20, 0
        %s260 = sadd.s32 %s259, %s257
        %s261 = smul.addr %s260, 4
        %s262 = scalar_lea.vmem %s1, %s261
        %p263 = pneg %p84
        %p264 = pneg %p81
        %p265 = scmp.lt.s32.totalorder %s20, 0
        %s266 = scalar_select %p265, %s20, 0
        %s267 = scalar_lea.vmem %s2, %s266
        %p268 = pneg %p110
        %p269 = pneg %p107
        %p270 = pneg %p138
        %p271 = pneg %p135
        %s272 = smul.u32 4, %s19
        %p273 = scmp.lt.s32.totalorder %s272, 3
        %s274 = scalar_select %p273, %s272, 3
        %p275 = scmp.lt.s32.totalorder %s20, 0
        %s276 = scalar_select %p275, %s20, 0
        %s277 = sadd.s32 %s276, %s274
        %s278 = smul.addr %s277, 8
        %s279 = scalar_lea.vmem %s3, %s278
        %s280 = smul.u32 4, %s19
        %s281 = smul.u32 8, %s21
        %s282 = smul.u32 128, %s21
        %p283 = scmp.lt.s32.totalorder %s282, 255
        %s284 = scalar_select %p283, %s282, 255
        %p285 = scmp.lt.s32.totalorder %s20, 0
        %s286 = scalar_select %p285, %s20, 0
        %s287 = sadd.s32 %s286, %s284
        %s288 = smul.addr %s287, 4
        %s289 = scalar_lea.vmem %s1, %s288
        %s290 = smul.u32 128, %s21
        %p291 = scmp.lt.s32.totalorder %s20, 0
        %s292 = scalar_select %p291, %s20, 0
        %s293 = scalar_lea.vmem %s2, %s292
        %s294 = smul.u32 4, %s19
        %p295 = scmp.lt.s32.totalorder %s294, 3
        %s296 = scalar_select %p295, %s294, 3
        %p297 = scmp.lt.s32.totalorder %s20, 0
        %s298 = scalar_select %p297, %s20, 0
        %s299 = sadd.s32 %s298, %s296
        %s300 = smul.addr %s299, 8
        %s301 = scalar_lea.vmem %s3, %s300
        %s302 = smul.u32 4, %s19
        %p304 = scmp.eq.s32.totalorder %s21, 0
        // Predicated region
        $region56: #{_lambda_.4} parent=50 // pred_check
          %p305 = pneg %p304
        $region57: #{_lambda_.4} parent=50 // pred_check_branch
          %307 = sbr.rel (%p305) target = $region59
        $region58: #{_lambda_.4} parent=50 // pred_region
          %308 = vst [vmem:[#allocation2] sm:$0xff] 0.0
          %309 = vst [vmem:[#allocation2 + $0x8] sm:$0xff] 0.0
          %310 = vst [vmem:[#allocation2 + $0x10] sm:$0xff] 0.0
          %311 = vst [vmem:[#allocation2 + $0x18] sm:$0xff] 0.0
        $region59: #{_lambda_.4} parent=50 // pred_fallthru
          _
        %v312 = vld [vmem:[#allocation2] sm:$0xff]
        %v313 = vld [vmem:[#allocation2 + $0x8] sm:$0xff]
        %v314 = vld [vmem:[#allocation2 + $0x10] sm:$0xff]
        %v315 = vld [vmem:[#allocation2 + $0x18] sm:$0xff]
        %v316 = vld [vmem:[%s245] sm:$0xff]
        %v317 = vld [vmem:[%s245 + $0x8] sm:$0xff]
        %v318 = vld [vmem:[%s245 + $0x10] sm:$0xff]
        %v319 = vld [vmem:[%s245 + $0x18] sm:$0xff]
        %v320 = vld [vmem:[%s245 + $0x20] sm:$0xff]
        %v321 = vld [vmem:[%s245 + $0x28] sm:$0xff]
        %v322 = vld [vmem:[%s245 + $0x30] sm:$0xff]
        %v323 = vld [vmem:[%s245 + $0x38] sm:$0xff]
        %v324 = vld [vmem:[%s245 + $0x40] sm:$0xff]
        %v325 = vld [vmem:[%s245 + $0x48] sm:$0xff]
        %v326 = vld [vmem:[%s245 + $0x50] sm:$0xff]
        %v327 = vld [vmem:[%s245 + $0x58] sm:$0xff]
        %v328 = vld [vmem:[%s245 + $0x60] sm:$0xff]
        %v329 = vld [vmem:[%s245 + $0x68] sm:$0xff]
        %v330 = vld [vmem:[%s245 + $0x70] sm:$0xff]
        %v331 = vld [vmem:[%s245 + $0x78] sm:$0xff]
        %v332 = vld [vmem:[%s289] sm:$0xf]
        %v333 = vld [vmem:[%s289 + $0x4] sm:$0xf]
        %v334 = vld [vmem:[%s289 + $0x8] sm:$0xf]
        %v335 = vld [vmem:[%s289 + $0xc] sm:$0xf]
        %v336 = vld [vmem:[%s289 + $0x10] sm:$0xf]
        %v337 = vld [vmem:[%s289 + $0x14] sm:$0xf]
        %v338 = vld [vmem:[%s289 + $0x18] sm:$0xf]
        %v339 = vld [vmem:[%s289 + $0x1c] sm:$0xf]
        %v340 = vld [vmem:[%s289 + $0x20] sm:$0xf]
        %v341 = vld [vmem:[%s289 + $0x24] sm:$0xf]
        %v342 = vld [vmem:[%s289 + $0x28] sm:$0xf]
        %v343 = vld [vmem:[%s289 + $0x2c] sm:$0xf]
        %v344 = vld [vmem:[%s289 + $0x30] sm:$0xf]
        %v345 = vld [vmem:[%s289 + $0x34] sm:$0xf]
        %v346 = vld [vmem:[%s289 + $0x38] sm:$0xf]
        %v347 = vld [vmem:[%s289 + $0x3c] sm:$0xf]
        %v348 = vld [vmem:[%s289 + $0x40] sm:$0xf]
        %v349 = vld [vmem:[%s289 + $0x44] sm:$0xf]
        %v350 = vld [vmem:[%s289 + $0x48] sm:$0xf]
        %v351 = vld [vmem:[%s289 + $0x4c] sm:$0xf]
        %v352 = vld [vmem:[%s289 + $0x50] sm:$0xf]
        %v353 = vld [vmem:[%s289 + $0x54] sm:$0xf]
        %v354 = vld [vmem:[%s289 + $0x58] sm:$0xf]
        %v355 = vld [vmem:[%s289 + $0x5c] sm:$0xf]
        %v356 = vld [vmem:[%s289 + $0x60] sm:$0xf]
        %v357 = vld [vmem:[%s289 + $0x64] sm:$0xf]
        %v358 = vld [vmem:[%s289 + $0x68] sm:$0xf]
        %v359 = vld [vmem:[%s289 + $0x6c] sm:$0xf]
        %v360 = vld [vmem:[%s289 + $0x70] sm:$0xf]
        %v361 = vld [vmem:[%s289 + $0x74] sm:$0xf]
        %v362 = vld [vmem:[%s289 + $0x78] sm:$0xf]
        %v363 = vld [vmem:[%s289 + $0x7c] sm:$0xf]
        %v364 = vld [vmem:[%s289 + $0x80] sm:$0xf]
        %v365 = vld [vmem:[%s289 + $0x84] sm:$0xf]
        %v366 = vld [vmem:[%s289 + $0x88] sm:$0xf]
        %v367 = vld [vmem:[%s289 + $0x8c] sm:$0xf]
        %v368 = vld [vmem:[%s289 + $0x90] sm:$0xf]
        %v369 = vld [vmem:[%s289 + $0x94] sm:$0xf]
        %v370 = vld [vmem:[%s289 + $0x98] sm:$0xf]
        %v371 = vld [vmem:[%s289 + $0x9c] sm:$0xf]
        %v372 = vld [vmem:[%s289 + $0xa0] sm:$0xf]
        %v373 = vld [vmem:[%s289 + $0xa4] sm:$0xf]
        %v374 = vld [vmem:[%s289 + $0xa8] sm:$0xf]
        %v375 = vld [vmem:[%s289 + $0xac] sm:$0xf]
        %v376 = vld [vmem:[%s289 + $0xb0] sm:$0xf]
        %v377 = vld [vmem:[%s289 + $0xb4] sm:$0xf]
        %v378 = vld [vmem:[%s289 + $0xb8] sm:$0xf]
        %v379 = vld [vmem:[%s289 + $0xbc] sm:$0xf]
        %v380 = vld [vmem:[%s289 + $0xc0] sm:$0xf]
        %v381 = vld [vmem:[%s289 + $0xc4] sm:$0xf]
        %v382 = vld [vmem:[%s289 + $0xc8] sm:$0xf]
        %v383 = vld [vmem:[%s289 + $0xcc] sm:$0xf]
        %v384 = vld [vmem:[%s289 + $0xd0] sm:$0xf]
        %v385 = vld [vmem:[%s289 + $0xd4] sm:$0xf]
        %v386 = vld [vmem:[%s289 + $0xd8] sm:$0xf]
        %v387 = vld [vmem:[%s289 + $0xdc] sm:$0xf]
        %v388 = vld [vmem:[%s289 + $0xe0] sm:$0xf]
        %v389 = vld [vmem:[%s289 + $0xe4] sm:$0xf]
        %v390 = vld [vmem:[%s289 + $0xe8] sm:$0xf]
        %v391 = vld [vmem:[%s289 + $0xec] sm:$0xf]
        %v392 = vld [vmem:[%s289 + $0xf0] sm:$0xf]
        %v393 = vld [vmem:[%s289 + $0xf4] sm:$0xf]
        %v394 = vld [vmem:[%s289 + $0xf8] sm:$0xf]
        %v395 = vld [vmem:[%s289 + $0xfc] sm:$0xf]
        %v396 = vld [vmem:[%s289 + $0x100] sm:$0xf]
        %v397 = vld [vmem:[%s289 + $0x104] sm:$0xf]
        %v398 = vld [vmem:[%s289 + $0x108] sm:$0xf]
        %v399 = vld [vmem:[%s289 + $0x10c] sm:$0xf]
        %v400 = vld [vmem:[%s289 + $0x110] sm:$0xf]
        %v401 = vld [vmem:[%s289 + $0x114] sm:$0xf]
        %v402 = vld [vmem:[%s289 + $0x118] sm:$0xf]
        %v403 = vld [vmem:[%s289 + $0x11c] sm:$0xf]
        %v404 = vld [vmem:[%s289 + $0x120] sm:$0xf]
        %v405 = vld [vmem:[%s289 + $0x124] sm:$0xf]
        %v406 = vld [vmem:[%s289 + $0x128] sm:$0xf]
        %v407 = vld [vmem:[%s289 + $0x12c] sm:$0xf]
        %v408 = vld [vmem:[%s289 + $0x130] sm:$0xf]
        %v409 = vld [vmem:[%s289 + $0x134] sm:$0xf]
        %v410 = vld [vmem:[%s289 + $0x138] sm:$0xf]
        %v411 = vld [vmem:[%s289 + $0x13c] sm:$0xf]
        %v412 = vld [vmem:[%s289 + $0x140] sm:$0xf]
        %v413 = vld [vmem:[%s289 + $0x144] sm:$0xf]
        %v414 = vld [vmem:[%s289 + $0x148] sm:$0xf]
        %v415 = vld [vmem:[%s289 + $0x14c] sm:$0xf]
        %v416 = vld [vmem:[%s289 + $0x150] sm:$0xf]
        %v417 = vld [vmem:[%s289 + $0x154] sm:$0xf]
        %v418 = vld [vmem:[%s289 + $0x158] sm:$0xf]
        %v419 = vld [vmem:[%s289 + $0x15c] sm:$0xf]
        %v420 = vld [vmem:[%s289 + $0x160] sm:$0xf]
        %v421 = vld [vmem:[%s289 + $0x164] sm:$0xf]
        %v422 = vld [vmem:[%s289 + $0x168] sm:$0xf]
        %v423 = vld [vmem:[%s289 + $0x16c] sm:$0xf]
        %v424 = vld [vmem:[%s289 + $0x170] sm:$0xf]
        %v425 = vld [vmem:[%s289 + $0x174] sm:$0xf]
        %v426 = vld [vmem:[%s289 + $0x178] sm:$0xf]
        %v427 = vld [vmem:[%s289 + $0x17c] sm:$0xf]
        %v428 = vld [vmem:[%s289 + $0x180] sm:$0xf]
        %v429 = vld [vmem:[%s289 + $0x184] sm:$0xf]
        %v430 = vld [vmem:[%s289 + $0x188] sm:$0xf]
        %v431 = vld [vmem:[%s289 + $0x18c] sm:$0xf]
        %v432 = vld [vmem:[%s289 + $0x190] sm:$0xf]
        %v433 = vld [vmem:[%s289 + $0x194] sm:$0xf]
        %v434 = vld [vmem:[%s289 + $0x198] sm:$0xf]
        %v435 = vld [vmem:[%s289 + $0x19c] sm:$0xf]
        %v436 = vld [vmem:[%s289 + $0x1a0] sm:$0xf]
        %v437 = vld [vmem:[%s289 + $0x1a4] sm:$0xf]
        %v438 = vld [vmem:[%s289 + $0x1a8] sm:$0xf]
        %v439 = vld [vmem:[%s289 + $0x1ac] sm:$0xf]
        %v440 = vld [vmem:[%s289 + $0x1b0] sm:$0xf]
        %v441 = vld [vmem:[%s289 + $0x1b4] sm:$0xf]
        %v442 = vld [vmem:[%s289 + $0x1b8] sm:$0xf]
        %v443 = vld [vmem:[%s289 + $0x1bc] sm:$0xf]
        %v444 = vld [vmem:[%s289 + $0x1c0] sm:$0xf]
        %v445 = vld [vmem:[%s289 + $0x1c4] sm:$0xf]
        %v446 = vld [vmem:[%s289 + $0x1c8] sm:$0xf]
        %v447 = vld [vmem:[%s289 + $0x1cc] sm:$0xf]
        %v448 = vld [vmem:[%s289 + $0x1d0] sm:$0xf]
        %v449 = vld [vmem:[%s289 + $0x1d4] sm:$0xf]
        %v450 = vld [vmem:[%s289 + $0x1d8] sm:$0xf]
        %v451 = vld [vmem:[%s289 + $0x1dc] sm:$0xf]
        %v452 = vld [vmem:[%s289 + $0x1e0] sm:$0xf]
        %v453 = vld [vmem:[%s289 + $0x1e4] sm:$0xf]
        %v454 = vld [vmem:[%s289 + $0x1e8] sm:$0xf]
        %v455 = vld [vmem:[%s289 + $0x1ec] sm:$0xf]
        %v456 = vld [vmem:[%s289 + $0x1f0] sm:$0xf]
        %v457 = vld [vmem:[%s289 + $0x1f4] sm:$0xf]
        %v458 = vld [vmem:[%s289 + $0x1f8] sm:$0xf]
        %v459 = vld [vmem:[%s289 + $0x1fc] sm:$0xf]
        %v476 = vunpack.c.l.b16 %v316
        %v477 = vunpack.c.h.b16 %v316
        %v478 = vunpack.c.l.b16 %v317
        %v479 = vunpack.c.h.b16 %v317
        %v480 = vunpack.c.l.b16 %v318
        %v481 = vunpack.c.h.b16 %v318
        %v482 = vunpack.c.l.b16 %v319
        %v483 = vunpack.c.h.b16 %v319
        %v484 = vunpack.c.l.b16 %v320
        %v485 = vunpack.c.h.b16 %v320
        %v486 = vunpack.c.l.b16 %v321
        %v487 = vunpack.c.h.b16 %v321
        %v488 = vunpack.c.l.b16 %v322
        %v489 = vunpack.c.h.b16 %v322
        %v490 = vunpack.c.l.b16 %v323
        %v491 = vunpack.c.h.b16 %v323
        %v492 = vunpack.c.l.b16 %v324
        %v493 = vunpack.c.h.b16 %v324
        %v494 = vunpack.c.l.b16 %v325
        %v495 = vunpack.c.h.b16 %v325
        %v496 = vunpack.c.l.b16 %v326
        %v497 = vunpack.c.h.b16 %v326
        %v498 = vunpack.c.l.b16 %v327
        %v499 = vunpack.c.h.b16 %v327
        %v500 = vunpack.c.l.b16 %v328
        %v501 = vunpack.c.h.b16 %v328
        %v502 = vunpack.c.l.b16 %v329
        %v503 = vunpack.c.h.b16 %v329
        %v504 = vunpack.c.l.b16 %v330
        %v505 = vunpack.c.h.b16 %v330
        %v506 = vunpack.c.l.b16 %v331
        %v507 = vunpack.c.h.b16 %v331
        %v508 = vpack.c.b16 %v484, %v476
        %v509 = vpack.c.b16 %v485, %v477
        %v510 = vpack.c.b16 %v486, %v478
        %v511 = vpack.c.b16 %v487, %v479
        %v512 = vpack.c.b16 %v488, %v480
        %v513 = vpack.c.b16 %v489, %v481
        %v514 = vpack.c.b16 %v490, %v482
        %v515 = vpack.c.b16 %v491, %v483
        %v516 = vpack.c.b16 %v500, %v492
        %v517 = vpack.c.b16 %v501, %v493
        %v518 = vpack.c.b16 %v502, %v494
        %v519 = vpack.c.b16 %v503, %v495
        %v520 = vpack.c.b16 %v504, %v496
        %v521 = vpack.c.b16 %v505, %v497
        %v522 = vpack.c.b16 %v506, %v498
        %v523 = vpack.c.b16 %v507, %v499
        %v668 = vunpack.c.l.b16 %v332
        %v669 = vunpack.c.l.b16 %v333
        %v670 = vunpack.c.l.b16 %v334
        %v671 = vunpack.c.l.b16 %v335
        %v672 = vunpack.c.l.b16 %v336
        %v673 = vunpack.c.l.b16 %v337
        %v674 = vunpack.c.l.b16 %v338
        %v675 = vunpack.c.l.b16 %v339
        %v676 = vunpack.c.l.b16 %v340
        %v677 = vunpack.c.l.b16 %v341
        %v678 = vunpack.c.l.b16 %v342
        %v679 = vunpack.c.l.b16 %v343
        %v680 = vunpack.c.l.b16 %v344
        %v681 = vunpack.c.l.b16 %v345
        %v682 = vunpack.c.l.b16 %v346
        %v683 = vunpack.c.l.b16 %v347
        %v684 = vunpack.c.l.b16 %v348
        %v685 = vunpack.c.l.b16 %v349
        %v686 = vunpack.c.l.b16 %v350
        %v687 = vunpack.c.l.b16 %v351
        %v688 = vunpack.c.l.b16 %v352
        %v689 = vunpack.c.l.b16 %v353
        %v690 = vunpack.c.l.b16 %v354
        %v691 = vunpack.c.l.b16 %v355
        %v692 = vunpack.c.l.b16 %v356
        %v693 = vunpack.c.l.b16 %v357
        %v694 = vunpack.c.l.b16 %v358
        %v695 = vunpack.c.l.b16 %v359
        %v696 = vunpack.c.l.b16 %v360
        %v697 = vunpack.c.l.b16 %v361
        %v698 = vunpack.c.l.b16 %v362
        %v699 = vunpack.c.l.b16 %v363
        %v700 = vunpack.c.l.b16 %v364
        %v701 = vunpack.c.l.b16 %v365
        %v702 = vunpack.c.l.b16 %v366
        %v703 = vunpack.c.l.b16 %v367
        %v704 = vunpack.c.l.b16 %v368
        %v705 = vunpack.c.l.b16 %v369
        %v706 = vunpack.c.l.b16 %v370
        %v707 = vunpack.c.l.b16 %v371
        %v708 = vunpack.c.l.b16 %v372
        %v709 = vunpack.c.l.b16 %v373
        %v710 = vunpack.c.l.b16 %v374
        %v711 = vunpack.c.l.b16 %v375
        %v712 = vunpack.c.l.b16 %v376
        %v713 = vunpack.c.l.b16 %v377
        %v714 = vunpack.c.l.b16 %v378
        %v715 = vunpack.c.l.b16 %v379
        %v716 = vunpack.c.l.b16 %v380
        %v717 = vunpack.c.l.b16 %v381
        %v718 = vunpack.c.l.b16 %v382
        %v719 = vunpack.c.l.b16 %v383
        %v720 = vunpack.c.l.b16 %v384
        %v721 = vunpack.c.l.b16 %v385
        %v722 = vunpack.c.l.b16 %v386
        %v723 = vunpack.c.l.b16 %v387
        %v724 = vunpack.c.l.b16 %v388
        %v725 = vunpack.c.l.b16 %v389
        %v726 = vunpack.c.l.b16 %v390
        %v727 = vunpack.c.l.b16 %v391
        %v728 = vunpack.c.l.b16 %v392
        %v729 = vunpack.c.l.b16 %v393
        %v730 = vunpack.c.l.b16 %v394
        %v731 = vunpack.c.l.b16 %v395
        %v732 = vunpack.c.l.b16 %v396
        %v733 = vunpack.c.l.b16 %v397
        %v734 = vunpack.c.l.b16 %v398
        %v735 = vunpack.c.l.b16 %v399
        %v736 = vunpack.c.l.b16 %v400
        %v737 = vunpack.c.l.b16 %v401
        %v738 = vunpack.c.l.b16 %v402
        %v739 = vunpack.c.l.b16 %v403
        %v740 = vunpack.c.l.b16 %v404
        %v741 = vunpack.c.l.b16 %v405
        %v742 = vunpack.c.l.b16 %v406
        %v743 = vunpack.c.l.b16 %v407
        %v744 = vunpack.c.l.b16 %v408
        %v745 = vunpack.c.l.b16 %v409
        %v746 = vunpack.c.l.b16 %v410
        %v747 = vunpack.c.l.b16 %v411
        %v748 = vunpack.c.l.b16 %v412
        %v749 = vunpack.c.l.b16 %v413
        %v750 = vunpack.c.l.b16 %v414
        %v751 = vunpack.c.l.b16 %v415
        %v752 = vunpack.c.l.b16 %v416
        %v753 = vunpack.c.l.b16 %v417
        %v754 = vunpack.c.l.b16 %v418
        %v755 = vunpack.c.l.b16 %v419
        %v756 = vunpack.c.l.b16 %v420
        %v757 = vunpack.c.l.b16 %v421
        %v758 = vunpack.c.l.b16 %v422
        %v759 = vunpack.c.l.b16 %v423
        %v760 = vunpack.c.l.b16 %v424
        %v761 = vunpack.c.l.b16 %v425
        %v762 = vunpack.c.l.b16 %v426
        %v763 = vunpack.c.l.b16 %v427
        %v764 = vunpack.c.l.b16 %v428
        %v765 = vunpack.c.l.b16 %v429
        %v766 = vunpack.c.l.b16 %v430
        %v767 = vunpack.c.l.b16 %v431
        %v768 = vunpack.c.l.b16 %v432
        %v769 = vunpack.c.l.b16 %v433
        %v770 = vunpack.c.l.b16 %v434
        %v771 = vunpack.c.l.b16 %v435
        %v772 = vunpack.c.l.b16 %v436
        %v773 = vunpack.c.l.b16 %v437
        %v774 = vunpack.c.l.b16 %v438
        %v775 = vunpack.c.l.b16 %v439
        %v776 = vunpack.c.l.b16 %v440
        %v777 = vunpack.c.l.b16 %v441
        %v778 = vunpack.c.l.b16 %v442
        %v779 = vunpack.c.l.b16 %v443
        %v780 = vunpack.c.l.b16 %v444
        %v781 = vunpack.c.l.b16 %v445
        %v782 = vunpack.c.l.b16 %v446
        %v783 = vunpack.c.l.b16 %v447
        %v784 = vunpack.c.l.b16 %v448
        %v785 = vunpack.c.l.b16 %v449
        %v786 = vunpack.c.l.b16 %v450
        %v787 = vunpack.c.l.b16 %v451
        %v788 = vunpack.c.l.b16 %v452
        %v789 = vunpack.c.l.b16 %v453
        %v790 = vunpack.c.l.b16 %v454
        %v791 = vunpack.c.l.b16 %v455
        %v792 = vunpack.c.l.b16 %v456
        %v793 = vunpack.c.l.b16 %v457
        %v794 = vunpack.c.l.b16 %v458
        %v795 = vunpack.c.l.b16 %v459
        %v796 = vpack.c.b16 %v669, %v668
        %v797 = vpack.c.b16 %v671, %v670
        %v798 = vpack.c.b16 %v673, %v672
        %v799 = vpack.c.b16 %v675, %v674
        %v800 = vpack.c.b16 %v677, %v676
        %v801 = vpack.c.b16 %v679, %v678
        %v802 = vpack.c.b16 %v681, %v680
        %v803 = vpack.c.b16 %v683, %v682
        %v804 = vpack.c.b16 %v685, %v684
        %v805 = vpack.c.b16 %v687, %v686
        %v806 = vpack.c.b16 %v689, %v688
        %v807 = vpack.c.b16 %v691, %v690
        %v808 = vpack.c.b16 %v693, %v692
        %v809 = vpack.c.b16 %v695, %v694
        %v810 = vpack.c.b16 %v697, %v696
        %v811 = vpack.c.b16 %v699, %v698
        %v812 = vpack.c.b16 %v701, %v700
        %v813 = vpack.c.b16 %v703, %v702
        %v814 = vpack.c.b16 %v705, %v704
        %v815 = vpack.c.b16 %v707, %v706
        %v816 = vpack.c.b16 %v709, %v708
        %v817 = vpack.c.b16 %v711, %v710
        %v818 = vpack.c.b16 %v713, %v712
        %v819 = vpack.c.b16 %v715, %v714
        %v820 = vpack.c.b16 %v717, %v716
        %v821 = vpack.c.b16 %v719, %v718
        %v822 = vpack.c.b16 %v721, %v720
        %v823 = vpack.c.b16 %v723, %v722
        %v824 = vpack.c.b16 %v725, %v724
        %v825 = vpack.c.b16 %v727, %v726
        %v826 = vpack.c.b16 %v729, %v728
        %v827 = vpack.c.b16 %v731, %v730
        %v828 = vpack.c.b16 %v733, %v732
        %v829 = vpack.c.b16 %v735, %v734
        %v830 = vpack.c.b16 %v737, %v736
        %v831 = vpack.c.b16 %v739, %v738
        %v832 = vpack.c.b16 %v741, %v740
        %v833 = vpack.c.b16 %v743, %v742
        %v834 = vpack.c.b16 %v745, %v744
        %v835 = vpack.c.b16 %v747, %v746
        %v836 = vpack.c.b16 %v749, %v748
        %v837 = vpack.c.b16 %v751, %v750
        %v838 = vpack.c.b16 %v753, %v752
        %v839 = vpack.c.b16 %v755, %v754
        %v840 = vpack.c.b16 %v757, %v756
        %v841 = vpack.c.b16 %v759, %v758
        %v842 = vpack.c.b16 %v761, %v760
        %v843 = vpack.c.b16 %v763, %v762
        %v844 = vpack.c.b16 %v765, %v764
        %v845 = vpack.c.b16 %v767, %v766
        %v846 = vpack.c.b16 %v769, %v768
        %v847 = vpack.c.b16 %v771, %v770
        %v848 = vpack.c.b16 %v773, %v772
        %v849 = vpack.c.b16 %v775, %v774
        %v850 = vpack.c.b16 %v777, %v776
        %v851 = vpack.c.b16 %v779, %v778
        %v852 = vpack.c.b16 %v781, %v780
        %v853 = vpack.c.b16 %v783, %v782
        %v854 = vpack.c.b16 %v785, %v784
        %v855 = vpack.c.b16 %v787, %v786
        %v856 = vpack.c.b16 %v789, %v788
        %v857 = vpack.c.b16 %v791, %v790
        %v858 = vpack.c.b16 %v793, %v792
        %v859 = vpack.c.b16 %v795, %v794
        %924 = vmatprep.subr.bf16.mxu0 0
        %925 = vmatpush1.bf16.msra.mxu0 %v803
        %926 = vmatprep.subr.bf16.mxu0 0
        %927 = vmatpush1.bf16.msra.mxu0 %v802
        %928 = vmatprep.subr.bf16.mxu0 0
        %929 = vmatpush1.bf16.msra.mxu0 %v801
        %930 = vmatprep.subr.bf16.mxu0 0
        %931 = vmatpush1.bf16.msra.mxu0 %v800
        %932 = vmatprep.subr.bf16.mxu0 0
        %933 = vmatpush1.bf16.msra.mxu0 %v799
        %934 = vmatprep.subr.bf16.mxu0 0
        %935 = vmatpush1.bf16.msra.mxu0 %v798
        %936 = vmatprep.subr.bf16.mxu0 0
        %937 = vmatpush1.bf16.msra.mxu0 %v797
        %938 = vmatprep.subr.bf16.mxu0 0
        %939 = vmatpush1.bf16.msra.mxu0 %v796
        %940 = vmatprep.subr.bf16.mxu0 0
        %941 = vmatpush2.bf16.msra.mxu0 %v811
        %942 = vmatprep.subr.bf16.mxu0 0
        %943 = vmatpush2.bf16.msra.mxu0 %v810
        %944 = vmatprep.subr.bf16.mxu0 0
        %945 = vmatpush2.bf16.msra.mxu0 %v809
        %946 = vmatprep.subr.bf16.mxu0 0
        %947 = vmatpush2.bf16.msra.mxu0 %v808
        %948 = vmatprep.subr.bf16.mxu0 0
        %949 = vmatpush2.bf16.msra.mxu0 %v807
        %950 = vmatprep.subr.bf16.mxu0 0
        %951 = vmatpush2.bf16.msra.mxu0 %v806
        %952 = vmatprep.subr.bf16.mxu0 0
        %953 = vmatpush2.bf16.msra.mxu0 %v805
        %954 = vmatprep.subr.bf16.mxu0 0
        %955 = vmatpush2.bf16.msra.mxu0 %v804
        %956 = vmatprep.mubr.bf16.mxu0 %v509
        %957 = vmatmul.mubr.bf16.gmra.mxu0 %v508
        %v958 = vpop.f32.mrf.mxu0
        %v959 = vadd.f32 0.0, %v958
        %v960 = vpop.f32.mrf.mxu0
        %v961 = vpop.f32.mrf.mxu0
        %v962 = vadd.f32 0.0, %v961
        %v963 = vpop.f32.mrf.mxu0
        %964 = vmatprep.mubr.bf16.mxu0 %v517
        %965 = vmatmul.mubr.bf16.gmra.mxu0 %v516
        %v966 = vpop.f32.mrf.mxu0
        %v967 = vadd.f32 0.0, %v966
        %v968 = vpop.f32.mrf.mxu0
        %v969 = vpop.f32.mrf.mxu0
        %v970 = vadd.f32 0.0, %v969
        %v971 = vpop.f32.mrf.mxu0
        %972 = vdwg.mxu0
        %973 = vmatprep.subr.bf16.mxu0 0
        %974 = vmatpush1.bf16.msra.mxu0 %v819
        %975 = vmatprep.subr.bf16.mxu0 0
        %976 = vmatpush1.bf16.msra.mxu0 %v818
        %977 = vmatprep.subr.bf16.mxu0 0
        %978 = vmatpush1.bf16.msra.mxu0 %v817
        %979 = vmatprep.subr.bf16.mxu0 0
        %980 = vmatpush1.bf16.msra.mxu0 %v816
        %981 = vmatprep.subr.bf16.mxu0 0
        %982 = vmatpush1.bf16.msra.mxu0 %v815
        %983 = vmatprep.subr.bf16.mxu0 0
        %984 = vmatpush1.bf16.msra.mxu0 %v814
        %985 = vmatprep.subr.bf16.mxu0 0
        %986 = vmatpush1.bf16.msra.mxu0 %v813
        %987 = vmatprep.subr.bf16.mxu0 0
        %988 = vmatpush1.bf16.msra.mxu0 %v812
        %989 = vmatprep.subr.bf16.mxu0 0
        %990 = vmatpush2.bf16.msra.mxu0 %v827
        %991 = vmatprep.subr.bf16.mxu0 0
        %992 = vmatpush2.bf16.msra.mxu0 %v826
        %993 = vmatprep.subr.bf16.mxu0 0
        %994 = vmatpush2.bf16.msra.mxu0 %v825
        %995 = vmatprep.subr.bf16.mxu0 0
        %996 = vmatpush2.bf16.msra.mxu0 %v824
        %997 = vmatprep.subr.bf16.mxu0 0
        %998 = vmatpush2.bf16.msra.mxu0 %v823
        %999 = vmatprep.subr.bf16.mxu0 0
        %1000 = vmatpush2.bf16.msra.mxu0 %v822
        %1001 = vmatprep.subr.bf16.mxu0 0
        %1002 = vmatpush2.bf16.msra.mxu0 %v821
        %1003 = vmatprep.subr.bf16.mxu0 0
        %1004 = vmatpush2.bf16.msra.mxu0 %v820
        %1005 = vmatprep.mubr.bf16.mxu0 %v511
        %1006 = vmatmul.mubr.bf16.gmra.mxu0 %v510
        %v1007 = vpop.f32.mrf.mxu0
        %v1008 = vadd.f32 %v959, %v1007
        %v1009 = vpop.f32.mrf.mxu0
        %v1010 = vpop.f32.mrf.mxu0
        %v1011 = vadd.f32 %v962, %v1010
        %v1012 = vpop.f32.mrf.mxu0
        %1013 = vmatprep.mubr.bf16.mxu0 %v519
        %1014 = vmatmul.mubr.bf16.gmra.mxu0 %v518
        %v1015 = vpop.f32.mrf.mxu0
        %v1016 = vadd.f32 %v967, %v1015
        %v1017 = vpop.f32.mrf.mxu0
        %v1018 = vpop.f32.mrf.mxu0
        %v1019 = vadd.f32 %v970, %v1018
        %v1020 = vpop.f32.mrf.mxu0
        %1021 = vdwg.mxu0
        %1022 = vmatprep.subr.bf16.mxu0 0
        %1023 = vmatpush1.bf16.msra.mxu0 %v835
        %1024 = vmatprep.subr.bf16.mxu0 0
        %1025 = vmatpush1.bf16.msra.mxu0 %v834
        %1026 = vmatprep.subr.bf16.mxu0 0
        %1027 = vmatpush1.bf16.msra.mxu0 %v833
        %1028 = vmatprep.subr.bf16.mxu0 0
        %1029 = vmatpush1.bf16.msra.mxu0 %v832
        %1030 = vmatprep.subr.bf16.mxu0 0
        %1031 = vmatpush1.bf16.msra.mxu0 %v831
        %1032 = vmatprep.subr.bf16.mxu0 0
        %1033 = vmatpush1.bf16.msra.mxu0 %v830
        %1034 = vmatprep.subr.bf16.mxu0 0
        %1035 = vmatpush1.bf16.msra.mxu0 %v829
        %1036 = vmatprep.subr.bf16.mxu0 0
        %1037 = vmatpush1.bf16.msra.mxu0 %v828
        %1038 = vmatprep.subr.bf16.mxu0 0
        %1039 = vmatpush2.bf16.msra.mxu0 %v843
        %1040 = vmatprep.subr.bf16.mxu0 0
        %1041 = vmatpush2.bf16.msra.mxu0 %v842
        %1042 = vmatprep.subr.bf16.mxu0 0
        %1043 = vmatpush2.bf16.msra.mxu0 %v841
        %1044 = vmatprep.subr.bf16.mxu0 0
        %1045 = vmatpush2.bf16.msra.mxu0 %v840
        %1046 = vmatprep.subr.bf16.mxu0 0
        %1047 = vmatpush2.bf16.msra.mxu0 %v839
        %1048 = vmatprep.subr.bf16.mxu0 0
        %1049 = vmatpush2.bf16.msra.mxu0 %v838
        %1050 = vmatprep.subr.bf16.mxu0 0
        %1051 = vmatpush2.bf16.msra.mxu0 %v837
        %1052 = vmatprep.subr.bf16.mxu0 0
        %1053 = vmatpush2.bf16.msra.mxu0 %v836
        %1054 = vmatprep.mubr.bf16.mxu0 %v513
        %1055 = vmatmul.mubr.bf16.gmra.mxu0 %v512
        %v1056 = vpop.f32.mrf.mxu0
        %v1057 = vadd.f32 %v1008, %v1056
        %v1058 = vpop.f32.mrf.mxu0
        %v1059 = vpop.f32.mrf.mxu0
        %v1060 = vadd.f32 %v1011, %v1059
        %v1061 = vpop.f32.mrf.mxu0
        %1062 = vmatprep.mubr.bf16.mxu0 %v521
        %1063 = vmatmul.mubr.bf16.gmra.mxu0 %v520
        %v1064 = vpop.f32.mrf.mxu0
        %v1065 = vadd.f32 %v1016, %v1064
        %v1066 = vpop.f32.mrf.mxu0
        %v1067 = vpop.f32.mrf.mxu0
        %v1068 = vadd.f32 %v1019, %v1067
        %v1069 = vpop.f32.mrf.mxu0
        %1070 = vdwg.mxu0
        %1071 = vmatprep.subr.bf16.mxu0 0
        %1072 = vmatpush1.bf16.msra.mxu0 %v851
        %1073 = vmatprep.subr.bf16.mxu0 0
        %1074 = vmatpush1.bf16.msra.mxu0 %v850
        %1075 = vmatprep.subr.bf16.mxu0 0
        %1076 = vmatpush1.bf16.msra.mxu0 %v849
        %1077 = vmatprep.subr.bf16.mxu0 0
        %1078 = vmatpush1.bf16.msra.mxu0 %v848
        %1079 = vmatprep.subr.bf16.mxu0 0
        %1080 = vmatpush1.bf16.msra.mxu0 %v847
        %1081 = vmatprep.subr.bf16.mxu0 0
        %1082 = vmatpush1.bf16.msra.mxu0 %v846
        %1083 = vmatprep.subr.bf16.mxu0 0
        %1084 = vmatpush1.bf16.msra.mxu0 %v845
        %1085 = vmatprep.subr.bf16.mxu0 0
        %1086 = vmatpush1.bf16.msra.mxu0 %v844
        %1087 = vmatprep.subr.bf16.mxu0 0
        %1088 = vmatpush2.bf16.msra.mxu0 %v859
        %1089 = vmatprep.subr.bf16.mxu0 0
        %1090 = vmatpush2.bf16.msra.mxu0 %v858
        %1091 = vmatprep.subr.bf16.mxu0 0
        %1092 = vmatpush2.bf16.msra.mxu0 %v857
        %1093 = vmatprep.subr.bf16.mxu0 0
        %1094 = vmatpush2.bf16.msra.mxu0 %v856
        %1095 = vmatprep.subr.bf16.mxu0 0
        %1096 = vmatpush2.bf16.msra.mxu0 %v855
        %1097 = vmatprep.subr.bf16.mxu0 0
        %1098 = vmatpush2.bf16.msra.mxu0 %v854
        %1099 = vmatprep.subr.bf16.mxu0 0
        %1100 = vmatpush2.bf16.msra.mxu0 %v853
        %1101 = vmatprep.subr.bf16.mxu0 0
        %1102 = vmatpush2.bf16.msra.mxu0 %v852
        %1103 = vmatprep.mubr.bf16.mxu0 %v515
        %1104 = vmatmul.mubr.bf16.gmra.mxu0 %v514
        %v1105 = vpop.f32.mrf.mxu0
        %v1106 = vadd.f32 %v1057, %v1105
        %v1107 = vpop.f32.mrf.mxu0
        %v1108 = vpop.f32.mrf.mxu0
        %v1109 = vadd.f32 %v1060, %v1108
        %v1110 = vpop.f32.mrf.mxu0
        %1111 = vmatprep.mubr.bf16.mxu0 %v523
        %1112 = vmatmul.mubr.bf16.gmra.mxu0 %v522
        %v1113 = vpop.f32.mrf.mxu0
        %v1114 = vadd.f32 %v1065, %v1113
        %v1115 = vpop.f32.mrf.mxu0
        %v1116 = vpop.f32.mrf.mxu0
        %v1117 = vadd.f32 %v1068, %v1116
        %v1118 = vpop.f32.mrf.mxu0
        %1119 = vdwg.mxu0
        %v1120 = vadd.f32 %v312, %v1106
        %v1121 = vadd.f32 %v313, %v1109
        %v1122 = vadd.f32 %v314, %v1114
        %v1123 = vadd.f32 %v315, %v1117
        %1124 = vst [vmem:[#allocation2] sm:$0xff] %v1120
        %1125 = vst [vmem:[#allocation2 + $0x8] sm:$0xff] %v1121
        %1126 = vst [vmem:[#allocation2 + $0x10] sm:$0xff] %v1122
        %1127 = vst [vmem:[#allocation2 + $0x18] sm:$0xff] %v1123
        %p1128 = scmp.eq.s32.totalorder %s21, 1
        // Predicated region
        $region60: #{_lambda_.4} parent=50 // pred_check
          %p1129 = pneg %p1128
        $region61: #{_lambda_.4} parent=50 // pred_check_branch
          %1131 = sbr.rel (%p1129) target = $region63
        $region62: #{_lambda_.4} parent=50 // pred_region
          %v1132 = vld [vmem:[#allocation2] sm:$0xff]
          %v1133 = vld [vmem:[#allocation2 + $0x8] sm:$0xff]
          %v1134 = vld [vmem:[#allocation2 + $0x10] sm:$0xff]
          %v1135 = vld [vmem:[#allocation2 + $0x18] sm:$0xff]
          %v1136 = vld [vmem:[%s293] sm:$0x1]
          %v1138 = vlaneseq
          %v1139 = vshrl.u32 %v1138, 7
          %v1140 = vsub.s32 0, %v1139
          %v1141 = vrot.slane %v1136, %v1140
          %v1143 = vadd.f32 %v1132, %v1141
          %v1144 = vadd.f32 %v1133, %v1141
          %v1145 = vadd.f32 %v1134, %v1141
          %v1146 = vadd.f32 %v1135, %v1141
          %vm1147 = vcmp.ge.f32.partialorder %v1143, 0.0
          %vm1148 = vcmp.ge.f32.partialorder %v1144, 0.0
          %vm1149 = vcmp.ge.f32.partialorder %v1145, 0.0
          %vm1150 = vcmp.ge.f32.partialorder %v1146, 0.0
          %v1151 = vmul.f32 %v1143, 0.2
          %v1152 = vmul.f32 %v1144, 0.2
          %v1153 = vmul.f32 %v1145, 0.2
          %v1154 = vmul.f32 %v1146, 0.2
          %v1155 = vsel %vm1147, %v1143, %v1151
          %v1156 = vsel %vm1148, %v1144, %v1152
          %v1157 = vsel %vm1149, %v1145, %v1153
          %v1158 = vsel %vm1150, %v1146, %v1154
          %1159 = vst [vmem:[%s301] sm:$0xff] %v1155
          %1160 = vst [vmem:[%s301 + $0x8] sm:$0xff] %v1156
          %1161 = vst [vmem:[%s301 + $0x10] sm:$0xff] %v1157
          %1162 = vst [vmem:[%s301 + $0x18] sm:$0xff] %v1158
        $region63: #{_lambda_.4} parent=50 // pred_fallthru
          _
        %s1163 = smul.u32 4, %s19
        %p1164 = scmp.lt.s32.totalorder %s1163, 3
        %s1165 = scalar_select %p1164, %s1163, 3
        %p1166 = scmp.lt.s32.totalorder %s20, 0
        %s1167 = scalar_select %p1166, %s20, 0
        %s1168 = sadd.s32 %s1167, %s1165
        %s1169 = smul.addr %s1168, 8
        %s1170 = scalar_lea.vmem %s3, %s1169
        // Predicated region
        $region64: #{_lambda_.4} parent=50 // pred_check
          %p1171 = pneg %p135
        $region65: #{_lambda_.4} parent=50 // pred_check_branch
          %1173 = sbr.rel (%p1171) target = $region67
        $region66: #{_lambda_.4} parent=50 // pred_region
          %s1174 = smul.u32 4, %s19
        $region67: #{_lambda_.4} parent=50 // pred_fallthru
          _
        // Predicated region
        $region68: #{_lambda_.4} parent=50 // pred_check
          %p1175 = pneg %p135
        $region69: #{_lambda_.4} parent=50 // pred_check_branch
          %1177 = sbr.rel (%p1175) target = $region71
        $region70: #{_lambda_.4} parent=50 // pred_region
          %s1178 = smul.u32 4, %s19
          %p1179 = scmp.lt.s32.totalorder %s1178, 3
          %s1180 = scalar_select %p1179, %s1178, 3
          %p1181 = scmp.lt.s32.totalorder %s20, 0
          %s1182 = scalar_select %p1181, %s20, 0
          %s1183 = sadd.s32 %s1182, %s1180
          %s1184 = smul.addr %s1183, 8
          %s1185 = scalar_lea.vmem %s3, %s1184
        $region71: #{_lambda_.4} parent=50 // pred_fallthru
          _
      $region51: #{_lambda_.4} parent=5 // pred_fallthru
        _
      %p1186 = scmp.le.s32.totalorder 2, %s9
      // Predicated region
      $region72: #{_lambda_.4} parent=5 // pred_check
        %p1187 = pneg %p1186
      $region73: #{_lambda_.4} parent=5 // pred_check_branch
        %1189 = sbr.rel (%p1187) target = $region75
      $region74: #{_lambda_.4} parent=5 // pred_region
        %s1190 = ssub.s32 %s9, 2
      $region75: #{_lambda_.4} parent=5 // pred_fallthru
        _
    $region6: #{_lambda_.4} parent=1 // loop_footer
      %s13 = sadd.s32 1, %s9
    $region7: #{_lambda_.4} parent=1 // loop_footer_branch
      %8 = sbr.rel target = $region3
    $region8: #{_lambda_.4} parent=1 // loop_exit
      _

// kernel: _lambda_.5
$region0: #{_lambda_.5}
  #allocation0 [shape = 'u32[]', space=smem, size = 0x4, offset = 0x4, fixed_abs, tag = 'smem constant byte address 0x4 - core index']
  #allocation1 [shape = 'u32[144,128]{1,0:T(1,128)}', space=vmem, size = 0x12000, scoped, tag = 'internal scratch']
  #allocation2 [shape = 'f32[8,128]{1,0:T(8,128)}', space=vmem, size = 0x1000, scoped, tag = 'scratch operand']
  %s0 = inlined_call_operand.vmem [shape: bf16[8,2048], index: 0, kind: input, shape index: {}]
  %s1 = inlined_call_operand.vmem [shape: bf16[2048,128], index: 1, kind: input, shape index: {}]
  %s2 = inlined_call_operand.vmem [shape: f32[1,128], index: 2, kind: input, shape index: {}]
  %s3 = inlined_call_operand.vmem [shape: f32[8,128], index: 3, kind: output, shape index: {}]
  %s4 = sld [smem:[#allocation0]]
  $region53: #{_lambda_.5} parent=0
    _
  %s6 = ssub.s32 1, %s4
  %s7 = scalar_select 0, %s6, %s4
  loop: start=0, step=1, limit=4
  $region2: #{_lambda_.5} parent=0 // loop_pre_header
    _
  $region3: #{_lambda_.5} parent=0 // loop_header
    %s9 = sphi 0, %s13
    %p10 = scmp.ge.s32.totalorder %s9, 4
    %s16 = sphi 0, %s35
    %s17 = sphi 0, %s31
    %s18 = sphi 0, %s27
    %s19 = sphi 0, %s16
    %s20 = sphi 0, %s17
    %s21 = sphi 0, %s18
    %s22 = sphi 0, %s19
    %s23 = sphi 0, %s20
    %s24 = sphi 0, %s21
    %s40 = sphi 0, %s42
    %s43 = sphi 0, %s40
    %s44 = sphi 0, %s43
    %s60 = sphi 0, %s44
    %s68 = sphi 0, %s70
    %s71 = sphi 0, %s68
    %s72 = sphi 0, %s71
    %s88 = sphi 0, %s72
    %s94 = sphi 0, %s96
    %s97 = sphi 0, %s94
    %s98 = sphi 0, %s97
    %s114 = sphi 0, %s98
    %s122 = sphi 0, %s124
    %s125 = sphi 0, %s122
    %s126 = sphi 0, %s125
    %s142 = sphi 0, %s126
  $region4: #{_lambda_.5} parent=0 // loop_header_branch
    %12 = sbr.rel (%p10) target = $region8
  $region5: #{_lambda_.5} parent=0 // loop_body
    %s14 = ssub.s32 %s9, 1
    %s15 = ssub.s32 %s9, 2
    %s25 = sadd.s32 1, %s18
    %p26 = scmp.ge.s32.totalorder %s25, 2
    %s27 = scalar_select %p26, 0, %s25
    %s28 = sadd.s32 1, %s17
    %s29 = scalar_select %p26, %s28, %s17
    %p30 = scmp.ge.s32.totalorder %s29, 1
    %s31 = scalar_select %p30, 0, %s29
    %s32 = sadd.s32 1, %s16
    %s33 = scalar_select %p30, %s32, %s16
    %p34 = scmp.ge.s32.totalorder %s33, 1
    %s35 = scalar_select %p34, 0, %s33
    %s36 = ssub.s32 %s16, %s35
    %s37 = ssub.s32 %s18, %s27
    %s38 = sor.u32 %s36, %s37
    %p39 = scmp.eq.s32.totalorder %s38, 0
    %s41 = sadd.s32 %s40, 1
    %s42 = scalar_select %p39, %s40, %s41
    %p45 = pneg %p39
    %p46 = scmp.eq.s32.totalorder %s9, 1
    %p47 = por %p45, %p46
    %p48 = scmp.ne.s32.totalorder %s40, %s43
    %p49 = scmp.eq.s32.totalorder %s9, 0
    %p50 = por %p48, %p49
    %p51 = scmp.ne.s32.totalorder %s40, %s43
    %p52 = scmp.eq.s32.totalorder %s14, 1
    %p53 = por %p51, %p52
    %p54 = scmp.ne.s32.totalorder %s43, %s44
    %p55 = scmp.eq.s32.totalorder %s14, 0
    %p56 = por %p54, %p55
    %p57 = scmp.ne.s32.totalorder %s43, %s44
    %p58 = scmp.eq.s32.totalorder %s15, 1
    %p59 = por %p57, %p58
    %p61 = scmp.ne.s32.totalorder %s44, %s60
    %p62 = scmp.eq.s32.totalorder %s15, 0
    %p63 = por %p61, %p62
    %s64 = ssub.s32 %s18, %s27
    %s65 = ssub.s32 %s17, %s31
    %s66 = sor.u32 %s64, %s65
    %p67 = scmp.eq.s32.totalorder %s66, 0
    %s69 = sadd.s32 %s68, 1
    %s70 = scalar_select %p67, %s68, %s69
    %p73 = pneg %p67
    %p74 = scmp.eq.s32.totalorder %s9, 1
    %p75 = por %p73, %p74
    %p76 = scmp.ne.s32.totalorder %s68, %s71
    %p77 = scmp.eq.s32.totalorder %s9, 0
    %p78 = por %p76, %p77
    %p79 = scmp.ne.s32.totalorder %s68, %s71
    %p80 = scmp.eq.s32.totalorder %s14, 1
    %p81 = por %p79, %p80
    %p82 = scmp.ne.s32.totalorder %s71, %s72
    %p83 = scmp.eq.s32.totalorder %s14, 0
    %p84 = por %p82, %p83
    %p85 = scmp.ne.s32.totalorder %s71, %s72
    %p86 = scmp.eq.s32.totalorder %s15, 1
    %p87 = por %p85, %p86
    %p89 = scmp.ne.s32.totalorder %s72, %s88
    %p90 = scmp.eq.s32.totalorder %s15, 0
    %p91 = por %p89, %p90
    %s92 = ssub.s32 %s17, %s31
    %p93 = scmp.eq.s32.totalorder %s92, 0
    %s95 = sadd.s32 %s94, 1
    %s96 = scalar_select %p93, %s94, %s95
    %p99 = pneg %p93
    %p100 = scmp.eq.s32.totalorder %s9, 1
    %p101 = por %p99, %p100
    %p102 = scmp.ne.s32.totalorder %s94, %s97
    %p103 = scmp.eq.s32.totalorder %s9, 0
    %p104 = por %p102, %p103
    %p105 = scmp.ne.s32.totalorder %s94, %s97
    %p106 = scmp.eq.s32.totalorder %s14, 1
    %p107 = por %p105, %p106
    %p108 = scmp.ne.s32.totalorder %s97, %s98
    %p109 = scmp.eq.s32.totalorder %s14, 0
    %p110 = por %p108, %p109
    %p111 = scmp.ne.s32.totalorder %s97, %s98
    %p112 = scmp.eq.s32.totalorder %s15, 1
    %p113 = por %p111, %p112
    %p115 = scmp.ne.s32.totalorder %s98, %s114
    %p116 = scmp.eq.s32.totalorder %s15, 0
    %p117 = por %p115, %p116
    %s118 = ssub.s32 %s16, %s35
    %s119 = ssub.s32 %s17, %s31
    %s120 = sor.u32 %s118, %s119
    %p121 = scmp.eq.s32.totalorder %s120, 0
    %s123 = sadd.s32 %s122, 1
    %s124 = scalar_select %p121, %s122, %s123
    %p127 = pneg %p121
    %p128 = scmp.eq.s32.totalorder %s9, 1
    %p129 = por %p127, %p128
    %p130 = scmp.ne.s32.totalorder %s122, %s125
    %p131 = scmp.eq.s32.totalorder %s9, 0
    %p132 = por %p130, %p131
    %p133 = scmp.ne.s32.totalorder %s122, %s125
    %p134 = scmp.eq.s32.totalorder %s14, 1
    %p135 = por %p133, %p134
    %p136 = scmp.ne.s32.totalorder %s125, %s126
    %p137 = scmp.eq.s32.totalorder %s14, 0
    %p138 = por %p136, %p137
    %p139 = scmp.ne.s32.totalorder %s125, %s126
    %p140 = scmp.eq.s32.totalorder %s15, 1
    %p141 = por %p139, %p140
    %p143 = scmp.ne.s32.totalorder %s126, %s142
    %p144 = scmp.eq.s32.totalorder %s15, 0
    %p145 = por %p143, %p144
    %p146 = scmp.le.s32.totalorder 1, %s9
    %p147 = scmp.lt.s32.totalorder %s9, 3
    %p148 = pnand %p146, %p147
    %p149 = pneg %p148
    // Predicated region
    $region9: #{_lambda_.5} parent=5 // pred_check
      _
    $region10: #{_lambda_.5} parent=5 // pred_check_branch
      %151 = sbr.rel (%p148) target = $region12
    $region11: #{_lambda_.5} parent=5 // pred_region
      %s152 = ssub.s32 %s9, 1
      // Predicated region
      $region13: #{_lambda_.5} parent=11 // pred_check
        %p153 = pneg %p110
      $region14: #{_lambda_.5} parent=11 // pred_check_branch
        %155 = sbr.rel (%p153) target = $region16
      $region15: #{_lambda_.5} parent=11 // pred_region
        %p156 = scmp.lt.s32.totalorder %s20, 0
        %s157 = scalar_select %p156, %s20, 0
        %s158 = scalar_lea.vmem %s2, %s157
      $region16: #{_lambda_.5} parent=11 // pred_fallthru
        _
    $region12: #{_lambda_.5} parent=5 // pred_fallthru
      _
    %p159 = scmp.lt.s32.totalorder %s9, 2
    // Predicated region
    $region17: #{_lambda_.5} parent=5 // pred_check
      %p160 = pneg %p159
    $region18: #{_lambda_.5} parent=5 // pred_check_branch
      %162 = sbr.rel (%p160) target = $region20
    $region19: #{_lambda_.5} parent=5 // pred_region
      // Predicated region
      $region21: #{_lambda_.5} parent=19 // pred_check
        %p163 = pneg %p50
      $region22: #{_lambda_.5} parent=19 // pred_check_branch
        %165 = sbr.rel (%p163) target = $region24
      $region23: #{_lambda_.5} parent=19 // pred_region
        %s166 = smul.u32 8, %s18
        %p167 = scmp.lt.s32.totalorder %s16, 0
        %s168 = scalar_select %p167, %s16, 0
        %p169 = scmp.lt.s32.totalorder %s166, 15
        %s170 = scalar_select %p169, %s166, 15
        %s171 = smul.addr %s168, 16
        %s172 = sadd.s32 %s170, %s171
        %s173 = smul.addr %s172, 4
        %s174 = scalar_lea.vmem %s0, %s173
        %s175 = smul.u32 8, %s18
      $region24: #{_lambda_.5} parent=19 // pred_fallthru
        _
      // Predicated region
      $region25: #{_lambda_.5} parent=19 // pred_check
        %p176 = pneg %p78
      $region26: #{_lambda_.5} parent=19 // pred_check_branch
        %178 = sbr.rel (%p176) target = $region28
      $region27: #{_lambda_.5} parent=19 // pred_region
        %s179 = smul.u32 128, %s18
        %p180 = scmp.lt.s32.totalorder %s179, 255
        %s181 = scalar_select %p180, %s179, 255
        %p182 = scmp.lt.s32.totalorder %s17, 0
        %s183 = scalar_select %p182, %s17, 0
        %s184 = sadd.s32 %s183, %s181
        %s185 = smul.addr %s184, 4
        %s186 = scalar_lea.vmem %s1, %s185
        %s187 = smul.u32 128, %s18
      $region28: #{_lambda_.5} parent=19 // pred_fallthru
        _
    $region20: #{_lambda_.5} parent=5 // pred_fallthru
      _
    %p188 = scmp.le.s32.totalorder 1, %s9
    %p189 = scmp.lt.s32.totalorder %s9, 3
    %p190 = pnand %p188, %p189
    %p191 = pneg %p190
    // Predicated region
    $region29: #{_lambda_.5} parent=5 // pred_check
      _
    $region30: #{_lambda_.5} parent=5 // pred_check_branch
      %193 = sbr.rel (%p190) target = $region32
    $region31: #{_lambda_.5} parent=5 // pred_region
      %s194 = ssub.s32 %s9, 1
      %s195 = smul.u32 8, %s21
      %p196 = scmp.lt.s32.totalorder %s19, 0
      %s197 = scalar_select %p196, %s19, 0
      %p198 = scmp.lt.s32.totalorder %s195, 15
      %s199 = scalar_select %p198, %s195, 15
      %s200 = smul.addr %s197, 16
      %s201 = sadd.s32 %s199, %s200
      %s202 = smul.addr %s201, 4
      %s203 = scalar_lea.vmem %s0, %s202
      %p204 = pneg %p56
      %p205 = pneg %p53
      %s206 = smul.u32 128, %s21
      %p207 = scmp.lt.s32.totalorder %s206, 255
      %s208 = scalar_select %p207, %s206, 255
      %p209 = scmp.lt.s32.totalorder %s20, 0
      %s210 = scalar_select %p209, %s20, 0
      %s211 = sadd.s32 %s210, %s208
      %s212 = smul.addr %s211, 4
      %s213 = scalar_lea.vmem %s1, %s212
      %p214 = pneg %p84
      %p215 = pneg %p81
      %p216 = scmp.lt.s32.totalorder %s20, 0
      %s217 = scalar_select %p216, %s20, 0
      %s218 = scalar_lea.vmem %s2, %s217
      %p219 = pneg %p110
      %p220 = pneg %p107
      %p221 = pneg %p138
      %p222 = pneg %p135
      %p223 = scmp.lt.s32.totalorder %s19, 0
      %s224 = scalar_select %p223, %s19, 0
      %p225 = scmp.lt.s32.totalorder %s20, 0
      %s226 = scalar_select %p225, %s20, 0
      %s227 = sadd.s32 %s226, %s224
      %s228 = smul.addr %s227, 8
      %s229 = scalar_lea.vmem %s3, %s228
      %s230 = smul.u32 8, %s21
      %p231 = scmp.lt.s32.totalorder %s19, 0
      %s232 = scalar_select %p231, %s19, 0
      %p233 = scmp.lt.s32.totalorder %s230, 15
      %s234 = scalar_select %p233, %s230, 15
      %s235 = smul.addr %s232, 16
      %s236 = sadd.s32 %s234, %s235
      %s237 = smul.addr %s236, 4
      %s238 = scalar_lea.vmem %s0, %s237
      %s239 = smul.u32 8, %s21
      %s240 = smul.u32 128, %s21
      %p241 = scmp.lt.s32.totalorder %s240, 255
      %s242 = scalar_select %p241, %s240, 255
      %p243 = scmp.lt.s32.totalorder %s20, 0
      %s244 = scalar_select %p243, %s20, 0
      %s245 = sadd.s32 %s244, %s242
      %s246 = smul.addr %s245, 4
      %s247 = scalar_lea.vmem %s1, %s246
      %s248 = smul.u32 128, %s21
      %p249 = scmp.lt.s32.totalorder %s20, 0
      %s250 = scalar_select %p249, %s20, 0
      %s251 = scalar_lea.vmem %s2, %s250
      %p252 = scmp.lt.s32.totalorder %s19, 0
      %s253 = scalar_select %p252, %s19, 0
      %p254 = scmp.lt.s32.totalorder %s20, 0
      %s255 = scalar_select %p254, %s20, 0
      %s256 = sadd.s32 %s255, %s253
      %s257 = smul.addr %s256, 8
      %s258 = scalar_lea.vmem %s3, %s257
      %p260 = scmp.eq.s32.totalorder %s21, 0
      // Predicated region
      $region33: #{_lambda_.5} parent=31 // pred_check
        %p261 = pneg %p260
      $region34: #{_lambda_.5} parent=31 // pred_check_branch
        %263 = sbr.rel (%p261) target = $region36
      $region35: #{_lambda_.5} parent=31 // pred_region
        %264 = vst [vmem:[#allocation2] sm:$0xff] 0.0
      $region36: #{_lambda_.5} parent=31 // pred_fallthru
        _
      %v265 = vld [vmem:[#allocation2] sm:$0xff]
      %v266 = vld [vmem:[%s238] sm:$0xff]
      %v267 = vld [vmem:[%s238 + $0x8] sm:$0xff]
      %v268 = vld [vmem:[%s238 + $0x10] sm:$0xff]
      %v269 = vld [vmem:[%s238 + $0x18] sm:$0xff]
      %v270 = vld [vmem:[%s247] sm:$0xf]
      %v271 = vld [vmem:[%s247 + $0x4] sm:$0xf]
      %v272 = vld [vmem:[%s247 + $0x8] sm:$0xf]
      %v273 = vld [vmem:[%s247 + $0xc] sm:$0xf]
      %v274 = vld [vmem:[%s247 + $0x10] sm:$0xf]
      %v275 = vld [vmem:[%s247 + $0x14] sm:$0xf]
      %v276 = vld [vmem:[%s247 + $0x18] sm:$0xf]
      %v277 = vld [vmem:[%s247 + $0x1c] sm:$0xf]
      %v278 = vld [vmem:[%s247 + $0x20] sm:$0xf]
      %v279 = vld [vmem:[%s247 + $0x24] sm:$0xf]
      %v280 = vld [vmem:[%s247 + $0x28] sm:$0xf]
      %v281 = vld [vmem:[%s247 + $0x2c] sm:$0xf]
      %v282 = vld [vmem:[%s247 + $0x30] sm:$0xf]
      %v283 = vld [vmem:[%s247 + $0x34] sm:$0xf]
      %v284 = vld [vmem:[%s247 + $0x38] sm:$0xf]
      %v285 = vld [vmem:[%s247 + $0x3c] sm:$0xf]
      %v286 = vld [vmem:[%s247 + $0x40] sm:$0xf]
      %v287 = vld [vmem:[%s247 + $0x44] sm:$0xf]
      %v288 = vld [vmem:[%s247 + $0x48] sm:$0xf]
      %v289 = vld [vmem:[%s247 + $0x4c] sm:$0xf]
      %v290 = vld [vmem:[%s247 + $0x50] sm:$0xf]
      %v291 = vld [vmem:[%s247 + $0x54] sm:$0xf]
      %v292 = vld [vmem:[%s247 + $0x58] sm:$0xf]
      %v293 = vld [vmem:[%s247 + $0x5c] sm:$0xf]
      %v294 = vld [vmem:[%s247 + $0x60] sm:$0xf]
      %v295 = vld [vmem:[%s247 + $0x64] sm:$0xf]
      %v296 = vld [vmem:[%s247 + $0x68] sm:$0xf]
      %v297 = vld [vmem:[%s247 + $0x6c] sm:$0xf]
      %v298 = vld [vmem:[%s247 + $0x70] sm:$0xf]
      %v299 = vld [vmem:[%s247 + $0x74] sm:$0xf]
      %v300 = vld [vmem:[%s247 + $0x78] sm:$0xf]
      %v301 = vld [vmem:[%s247 + $0x7c] sm:$0xf]
      %v302 = vld [vmem:[%s247 + $0x80] sm:$0xf]
      %v303 = vld [vmem:[%s247 + $0x84] sm:$0xf]
      %v304 = vld [vmem:[%s247 + $0x88] sm:$0xf]
      %v305 = vld [vmem:[%s247 + $0x8c] sm:$0xf]
      %v306 = vld [vmem:[%s247 + $0x90] sm:$0xf]
      %v307 = vld [vmem:[%s247 + $0x94] sm:$0xf]
      %v308 = vld [vmem:[%s247 + $0x98] sm:$0xf]
      %v309 = vld [vmem:[%s247 + $0x9c] sm:$0xf]
      %v310 = vld [vmem:[%s247 + $0xa0] sm:$0xf]
      %v311 = vld [vmem:[%s247 + $0xa4] sm:$0xf]
      %v312 = vld [vmem:[%s247 + $0xa8] sm:$0xf]
      %v313 = vld [vmem:[%s247 + $0xac] sm:$0xf]
      %v314 = vld [vmem:[%s247 + $0xb0] sm:$0xf]
      %v315 = vld [vmem:[%s247 + $0xb4] sm:$0xf]
      %v316 = vld [vmem:[%s247 + $0xb8] sm:$0xf]
      %v317 = vld [vmem:[%s247 + $0xbc] sm:$0xf]
      %v318 = vld [vmem:[%s247 + $0xc0] sm:$0xf]
      %v319 = vld [vmem:[%s247 + $0xc4] sm:$0xf]
      %v320 = vld [vmem:[%s247 + $0xc8] sm:$0xf]
      %v321 = vld [vmem:[%s247 + $0xcc] sm:$0xf]
      %v322 = vld [vmem:[%s247 + $0xd0] sm:$0xf]
      %v323 = vld [vmem:[%s247 + $0xd4] sm:$0xf]
      %v324 = vld [vmem:[%s247 + $0xd8] sm:$0xf]
      %v325 = vld [vmem:[%s247 + $0xdc] sm:$0xf]
      %v326 = vld [vmem:[%s247 + $0xe0] sm:$0xf]
      %v327 = vld [vmem:[%s247 + $0xe4] sm:$0xf]
      %v328 = vld [vmem:[%s247 + $0xe8] sm:$0xf]
      %v329 = vld [vmem:[%s247 + $0xec] sm:$0xf]
      %v330 = vld [vmem:[%s247 + $0xf0] sm:$0xf]
      %v331 = vld [vmem:[%s247 + $0xf4] sm:$0xf]
      %v332 = vld [vmem:[%s247 + $0xf8] sm:$0xf]
      %v333 = vld [vmem:[%s247 + $0xfc] sm:$0xf]
      %v334 = vld [vmem:[%s247 + $0x100] sm:$0xf]
      %v335 = vld [vmem:[%s247 + $0x104] sm:$0xf]
      %v336 = vld [vmem:[%s247 + $0x108] sm:$0xf]
      %v337 = vld [vmem:[%s247 + $0x10c] sm:$0xf]
      %v338 = vld [vmem:[%s247 + $0x110] sm:$0xf]
      %v339 = vld [vmem:[%s247 + $0x114] sm:$0xf]
      %v340 = vld [vmem:[%s247 + $0x118] sm:$0xf]
      %v341 = vld [vmem:[%s247 + $0x11c] sm:$0xf]
      %v342 = vld [vmem:[%s247 + $0x120] sm:$0xf]
      %v343 = vld [vmem:[%s247 + $0x124] sm:$0xf]
      %v344 = vld [vmem:[%s247 + $0x128] sm:$0xf]
      %v345 = vld [vmem:[%s247 + $0x12c] sm:$0xf]
      %v346 = vld [vmem:[%s247 + $0x130] sm:$0xf]
      %v347 = vld [vmem:[%s247 + $0x134] sm:$0xf]
      %v348 = vld [vmem:[%s247 + $0x138] sm:$0xf]
      %v349 = vld [vmem:[%s247 + $0x13c] sm:$0xf]
      %v350 = vld [vmem:[%s247 + $0x140] sm:$0xf]
      %v351 = vld [vmem:[%s247 + $0x144] sm:$0xf]
      %v352 = vld [vmem:[%s247 + $0x148] sm:$0xf]
      %v353 = vld [vmem:[%s247 + $0x14c] sm:$0xf]
      %v354 = vld [vmem:[%s247 + $0x150] sm:$0xf]
      %v355 = vld [vmem:[%s247 + $0x154] sm:$0xf]
      %v356 = vld [vmem:[%s247 + $0x158] sm:$0xf]
      %v357 = vld [vmem:[%s247 + $0x15c] sm:$0xf]
      %v358 = vld [vmem:[%s247 + $0x160] sm:$0xf]
      %v359 = vld [vmem:[%s247 + $0x164] sm:$0xf]
      %v360 = vld [vmem:[%s247 + $0x168] sm:$0xf]
      %v361 = vld [vmem:[%s247 + $0x16c] sm:$0xf]
      %v362 = vld [vmem:[%s247 + $0x170] sm:$0xf]
      %v363 = vld [vmem:[%s247 + $0x174] sm:$0xf]
      %v364 = vld [vmem:[%s247 + $0x178] sm:$0xf]
      %v365 = vld [vmem:[%s247 + $0x17c] sm:$0xf]
      %v366 = vld [vmem:[%s247 + $0x180] sm:$0xf]
      %v367 = vld [vmem:[%s247 + $0x184] sm:$0xf]
      %v368 = vld [vmem:[%s247 + $0x188] sm:$0xf]
      %v369 = vld [vmem:[%s247 + $0x18c] sm:$0xf]
      %v370 = vld [vmem:[%s247 + $0x190] sm:$0xf]
      %v371 = vld [vmem:[%s247 + $0x194] sm:$0xf]
      %v372 = vld [vmem:[%s247 + $0x198] sm:$0xf]
      %v373 = vld [vmem:[%s247 + $0x19c] sm:$0xf]
      %v374 = vld [vmem:[%s247 + $0x1a0] sm:$0xf]
      %v375 = vld [vmem:[%s247 + $0x1a4] sm:$0xf]
      %v376 = vld [vmem:[%s247 + $0x1a8] sm:$0xf]
      %v377 = vld [vmem:[%s247 + $0x1ac] sm:$0xf]
      %v378 = vld [vmem:[%s247 + $0x1b0] sm:$0xf]
      %v379 = vld [vmem:[%s247 + $0x1b4] sm:$0xf]
      %v380 = vld [vmem:[%s247 + $0x1b8] sm:$0xf]
      %v381 = vld [vmem:[%s247 + $0x1bc] sm:$0xf]
      %v382 = vld [vmem:[%s247 + $0x1c0] sm:$0xf]
      %v383 = vld [vmem:[%s247 + $0x1c4] sm:$0xf]
      %v384 = vld [vmem:[%s247 + $0x1c8] sm:$0xf]
      %v385 = vld [vmem:[%s247 + $0x1cc] sm:$0xf]
      %v386 = vld [vmem:[%s247 + $0x1d0] sm:$0xf]
      %v387 = vld [vmem:[%s247 + $0x1d4] sm:$0xf]
      %v388 = vld [vmem:[%s247 + $0x1d8] sm:$0xf]
      %v389 = vld [vmem:[%s247 + $0x1dc] sm:$0xf]
      %v390 = vld [vmem:[%s247 + $0x1e0] sm:$0xf]
      %v391 = vld [vmem:[%s247 + $0x1e4] sm:$0xf]
      %v392 = vld [vmem:[%s247 + $0x1e8] sm:$0xf]
      %v393 = vld [vmem:[%s247 + $0x1ec] sm:$0xf]
      %v394 = vld [vmem:[%s247 + $0x1f0] sm:$0xf]
      %v395 = vld [vmem:[%s247 + $0x1f4] sm:$0xf]
      %v396 = vld [vmem:[%s247 + $0x1f8] sm:$0xf]
      %v397 = vld [vmem:[%s247 + $0x1fc] sm:$0xf]
      %v402 = vunpack.c.l.b16 %v266
      %v403 = vunpack.c.h.b16 %v266
      %v404 = vunpack.c.l.b16 %v267
      %v405 = vunpack.c.h.b16 %v267
      %v406 = vunpack.c.l.b16 %v268
      %v407 = vunpack.c.h.b16 %v268
      %v408 = vunpack.c.l.b16 %v269
      %v409 = vunpack.c.h.b16 %v269
      %v410 = vpack.c.b16 %v402, %v402
      %v411 = vpack.c.b16 %v403, %v403
      %v412 = vpack.c.b16 %v404, %v404
      %v413 = vpack.c.b16 %v405, %v405
      %v414 = vpack.c.b16 %v406, %v406
      %v415 = vpack.c.b16 %v407, %v407
      %v416 = vpack.c.b16 %v408, %v408
      %v417 = vpack.c.b16 %v409, %v409
      %v554 = vunpack.c.l.b16 %v270
      %v555 = vunpack.c.l.b16 %v271
      %v556 = vunpack.c.l.b16 %v272
      %v557 = vunpack.c.l.b16 %v273
      %v558 = vunpack.c.l.b16 %v274
      %v559 = vunpack.c.l.b16 %v275
      %v560 = vunpack.c.l.b16 %v276
      %v561 = vunpack.c.l.b16 %v277
      %v562 = vunpack.c.l.b16 %v278
      %v563 = vunpack.c.l.b16 %v279
      %v564 = vunpack.c.l.b16 %v280
      %v565 = vunpack.c.l.b16 %v281
      %v566 = vunpack.c.l.b16 %v282
      %v567 = vunpack.c.l.b16 %v283
      %v568 = vunpack.c.l.b16 %v284
      %v569 = vunpack.c.l.b16 %v285
      %v570 = vunpack.c.l.b16 %v286
      %v571 = vunpack.c.l.b16 %v287
      %v572 = vunpack.c.l.b16 %v288
      %v573 = vunpack.c.l.b16 %v289
      %v574 = vunpack.c.l.b16 %v290
      %v575 = vunpack.c.l.b16 %v291
      %v576 = vunpack.c.l.b16 %v292
      %v577 = vunpack.c.l.b16 %v293
      %v578 = vunpack.c.l.b16 %v294
      %v579 = vunpack.c.l.b16 %v295
      %v580 = vunpack.c.l.b16 %v296
      %v581 = vunpack.c.l.b16 %v297
      %v582 = vunpack.c.l.b16 %v298
      %v583 = vunpack.c.l.b16 %v299
      %v584 = vunpack.c.l.b16 %v300
      %v585 = vunpack.c.l.b16 %v301
      %v586 = vunpack.c.l.b16 %v302
      %v587 = vunpack.c.l.b16 %v303
      %v588 = vunpack.c.l.b16 %v304
      %v589 = vunpack.c.l.b16 %v305
      %v590 = vunpack.c.l.b16 %v306
      %v591 = vunpack.c.l.b16 %v307
      %v592 = vunpack.c.l.b16 %v308
      %v593 = vunpack.c.l.b16 %v309
      %v594 = vunpack.c.l.b16 %v310
      %v595 = vunpack.c.l.b16 %v311
      %v596 = vunpack.c.l.b16 %v312
      %v597 = vunpack.c.l.b16 %v313
      %v598 = vunpack.c.l.b16 %v314
      %v599 = vunpack.c.l.b16 %v315
      %v600 = vunpack.c.l.b16 %v316
      %v601 = vunpack.c.l.b16 %v317
      %v602 = vunpack.c.l.b16 %v318
      %v603 = vunpack.c.l.b16 %v319
      %v604 = vunpack.c.l.b16 %v320
      %v605 = vunpack.c.l.b16 %v321
      %v606 = vunpack.c.l.b16 %v322
      %v607 = vunpack.c.l.b16 %v323
      %v608 = vunpack.c.l.b16 %v324
      %v609 = vunpack.c.l.b16 %v325
      %v610 = vunpack.c.l.b16 %v326
      %v611 = vunpack.c.l.b16 %v327
      %v612 = vunpack.c.l.b16 %v328
      %v613 = vunpack.c.l.b16 %v329
      %v614 = vunpack.c.l.b16 %v330
      %v615 = vunpack.c.l.b16 %v331
      %v616 = vunpack.c.l.b16 %v332
      %v617 = vunpack.c.l.b16 %v333
      %v618 = vunpack.c.l.b16 %v334
      %v619 = vunpack.c.l.b16 %v335
      %v620 = vunpack.c.l.b16 %v336
      %v621 = vunpack.c.l.b16 %v337
      %v622 = vunpack.c.l.b16 %v338
      %v623 = vunpack.c.l.b16 %v339
      %v624 = vunpack.c.l.b16 %v340
      %v625 = vunpack.c.l.b16 %v341
      %v626 = vunpack.c.l.b16 %v342
      %v627 = vunpack.c.l.b16 %v343
      %v628 = vunpack.c.l.b16 %v344
      %v629 = vunpack.c.l.b16 %v345
      %v630 = vunpack.c.l.b16 %v346
      %v631 = vunpack.c.l.b16 %v347
      %v632 = vunpack.c.l.b16 %v348
      %v633 = vunpack.c.l.b16 %v349
      %v634 = vunpack.c.l.b16 %v350
      %v635 = vunpack.c.l.b16 %v351
      %v636 = vunpack.c.l.b16 %v352
      %v637 = vunpack.c.l.b16 %v353
      %v638 = vunpack.c.l.b16 %v354
      %v639 = vunpack.c.l.b16 %v355
      %v640 = vunpack.c.l.b16 %v356
      %v641 = vunpack.c.l.b16 %v357
      %v642 = vunpack.c.l.b16 %v358
      %v643 = vunpack.c.l.b16 %v359
      %v644 = vunpack.c.l.b16 %v360
      %v645 = vunpack.c.l.b16 %v361
      %v646 = vunpack.c.l.b16 %v362
      %v647 = vunpack.c.l.b16 %v363
      %v648 = vunpack.c.l.b16 %v364
      %v649 = vunpack.c.l.b16 %v365
      %v650 = vunpack.c.l.b16 %v366
      %v651 = vunpack.c.l.b16 %v367
      %v652 = vunpack.c.l.b16 %v368
      %v653 = vunpack.c.l.b16 %v369
      %v654 = vunpack.c.l.b16 %v370
      %v655 = vunpack.c.l.b16 %v371
      %v656 = vunpack.c.l.b16 %v372
      %v657 = vunpack.c.l.b16 %v373
      %v658 = vunpack.c.l.b16 %v374
      %v659 = vunpack.c.l.b16 %v375
      %v660 = vunpack.c.l.b16 %v376
      %v661 = vunpack.c.l.b16 %v377
      %v662 = vunpack.c.l.b16 %v378
      %v663 = vunpack.c.l.b16 %v379
      %v664 = vunpack.c.l.b16 %v380
      %v665 = vunpack.c.l.b16 %v381
      %v666 = vunpack.c.l.b16 %v382
      %v667 = vunpack.c.l.b16 %v383
      %v668 = vunpack.c.l.b16 %v384
      %v669 = vunpack.c.l.b16 %v385
      %v670 = vunpack.c.l.b16 %v386
      %v671 = vunpack.c.l.b16 %v387
      %v672 = vunpack.c.l.b16 %v388
      %v673 = vunpack.c.l.b16 %v389
      %v674 = vunpack.c.l.b16 %v390
      %v675 = vunpack.c.l.b16 %v391
      %v676 = vunpack.c.l.b16 %v392
      %v677 = vunpack.c.l.b16 %v393
      %v678 = vunpack.c.l.b16 %v394
      %v679 = vunpack.c.l.b16 %v395
      %v680 = vunpack.c.l.b16 %v396
      %v681 = vunpack.c.l.b16 %v397
      %v682 = vpack.c.b16 %v555, %v554
      %v683 = vpack.c.b16 %v557, %v556
      %v684 = vpack.c.b16 %v559, %v558
      %v685 = vpack.c.b16 %v561, %v560
      %v686 = vpack.c.b16 %v563, %v562
      %v687 = vpack.c.b16 %v565, %v564
      %v688 = vpack.c.b16 %v567, %v566
      %v689 = vpack.c.b16 %v569, %v568
      %v690 = vpack.c.b16 %v571, %v570
      %v691 = vpack.c.b16 %v573, %v572
      %v692 = vpack.c.b16 %v575, %v574
      %v693 = vpack.c.b16 %v577, %v576
      %v694 = vpack.c.b16 %v579, %v578
      %v695 = vpack.c.b16 %v581, %v580
      %v696 = vpack.c.b16 %v583, %v582
      %v697 = vpack.c.b16 %v585, %v584
      %v698 = vpack.c.b16 %v587, %v586
      %v699 = vpack.c.b16 %v589, %v588
      %v700 = vpack.c.b16 %v591, %v590
      %v701 = vpack.c.b16 %v593, %v592
      %v702 = vpack.c.b16 %v595, %v594
      %v703 = vpack.c.b16 %v597, %v596
      %v704 = vpack.c.b16 %v599, %v598
      %v705 = vpack.c.b16 %v601, %v600
      %v706 = vpack.c.b16 %v603, %v602
      %v707 = vpack.c.b16 %v605, %v604
      %v708 = vpack.c.b16 %v607, %v606
      %v709 = vpack.c.b16 %v609, %v608
      %v710 = vpack.c.b16 %v611, %v610
      %v711 = vpack.c.b16 %v613, %v612
      %v712 = vpack.c.b16 %v615, %v614
      %v713 = vpack.c.b16 %v617, %v616
      %v714 = vpack.c.b16 %v619, %v618
      %v715 = vpack.c.b16 %v621, %v620
      %v716 = vpack.c.b16 %v623, %v622
      %v717 = vpack.c.b16 %v625, %v624
      %v718 = vpack.c.b16 %v627, %v626
      %v719 = vpack.c.b16 %v629, %v628
      %v720 = vpack.c.b16 %v631, %v630
      %v721 = vpack.c.b16 %v633, %v632
      %v722 = vpack.c.b16 %v635, %v634
      %v723 = vpack.c.b16 %v637, %v636
      %v724 = vpack.c.b16 %v639, %v638
      %v725 = vpack.c.b16 %v641, %v640
      %v726 = vpack.c.b16 %v643, %v642
      %v727 = vpack.c.b16 %v645, %v644
      %v728 = vpack.c.b16 %v647, %v646
      %v729 = vpack.c.b16 %v649, %v648
      %v730 = vpack.c.b16 %v651, %v650
      %v731 = vpack.c.b16 %v653, %v652
      %v732 = vpack.c.b16 %v655, %v654
      %v733 = vpack.c.b16 %v657, %v656
      %v734 = vpack.c.b16 %v659, %v658
      %v735 = vpack.c.b16 %v661, %v660
      %v736 = vpack.c.b16 %v663, %v662
      %v737 = vpack.c.b16 %v665, %v664
      %v738 = vpack.c.b16 %v667, %v666
      %v739 = vpack.c.b16 %v669, %v668
      %v740 = vpack.c.b16 %v671, %v670
      %v741 = vpack.c.b16 %v673, %v672
      %v742 = vpack.c.b16 %v675, %v674
      %v743 = vpack.c.b16 %v677, %v676
      %v744 = vpack.c.b16 %v679, %v678
      %v745 = vpack.c.b16 %v681, %v680
      %810 = vmatprep.subr.bf16.mxu0 0
      %811 = vmatpush1.bf16.msra.mxu0 %v689
      %812 = vmatprep.subr.bf16.mxu0 0
      %813 = vmatpush1.bf16.msra.mxu0 %v688
      %814 = vmatprep.subr.bf16.mxu0 0
      %815 = vmatpush1.bf16.msra.mxu0 %v687
      %816 = vmatprep.subr.bf16.mxu0 0
      %817 = vmatpush1.bf16.msra.mxu0 %v686
      %818 = vmatprep.subr.bf16.mxu0 0
      %819 = vmatpush1.bf16.msra.mxu0 %v685
      %820 = vmatprep.subr.bf16.mxu0 0
      %821 = vmatpush1.bf16.msra.mxu0 %v684
      %822 = vmatprep.subr.bf16.mxu0 0
      %823 = vmatpush1.bf16.msra.mxu0 %v683
      %824 = vmatprep.subr.bf16.mxu0 0
      %825 = vmatpush1.bf16.msra.mxu0 %v682
      %826 = vmatprep.subr.bf16.mxu0 0
      %827 = vmatpush2.bf16.msra.mxu0 %v697
      %828 = vmatprep.subr.bf16.mxu0 0
      %829 = vmatpush2.bf16.msra.mxu0 %v696
      %830 = vmatprep.subr.bf16.mxu0 0
      %831 = vmatpush2.bf16.msra.mxu0 %v695
      %832 = vmatprep.subr.bf16.mxu0 0
      %833 = vmatpush2.bf16.msra.mxu0 %v694
      %834 = vmatprep.subr.bf16.mxu0 0
      %835 = vmatpush2.bf16.msra.mxu0 %v693
      %836 = vmatprep.subr.bf16.mxu0 0
      %837 = vmatpush2.bf16.msra.mxu0 %v692
      %838 = vmatprep.subr.bf16.mxu0 0
      %839 = vmatpush2.bf16.msra.mxu0 %v691
      %840 = vmatprep.subr.bf16.mxu0 0
      %841 = vmatpush2.bf16.msra.mxu0 %v690
      %842 = vmatprep.mubr.bf16.mxu0 %v411
      %843 = vmatmul.mubr.bf16.gmra.mxu0 %v410
      %v844 = vpop.f32.mrf.mxu0
      %v845 = vadd.f32 0.0, %v844
      %v846 = vpop.f32.mrf.mxu0
      %v847 = vpop.f32.mrf.mxu0
      %v848 = vpop.f32.mrf.mxu0
      %849 = vdwg.mxu0
      %850 = vmatprep.subr.bf16.mxu0 0
      %851 = vmatpush1.bf16.msra.mxu0 %v705
      %852 = vmatprep.subr.bf16.mxu0 0
      %853 = vmatpush1.bf16.msra.mxu0 %v704
      %854 = vmatprep.subr.bf16.mxu0 0
      %855 = vmatpush1.bf16.msra.mxu0 %v703
      %856 = vmatprep.subr.bf16.mxu0 0
      %857 = vmatpush1.bf16.msra.mxu0 %v702
      %858 = vmatprep.subr.bf16.mxu0 0
      %859 = vmatpush1.bf16.msra.mxu0 %v701
      %860 = vmatprep.subr.bf16.mxu0 0
      %861 = vmatpush1.bf16.msra.mxu0 %v700
      %862 = vmatprep.subr.bf16.mxu0 0
      %863 = vmatpush1.bf16.msra.mxu0 %v699
      %864 = vmatprep.subr.bf16.mxu0 0
      %865 = vmatpush1.bf16.msra.mxu0 %v698
      %866 = vmatprep.subr.bf16.mxu0 0
      %867 = vmatpush2.bf16.msra.mxu0 %v713
      %868 = vmatprep.subr.bf16.mxu0 0
      %869 = vmatpush2.bf16.msra.mxu0 %v712
      %870 = vmatprep.subr.bf16.mxu0 0
      %871 = vmatpush2.bf16.msra.mxu0 %v711
      %872 = vmatprep.subr.bf16.mxu0 0
      %873 = vmatpush2.bf16.msra.mxu0 %v710
      %874 = vmatprep.subr.bf16.mxu0 0
      %875 = vmatpush2.bf16.msra.mxu0 %v709
      %876 = vmatprep.subr.bf16.mxu0 0
      %877 = vmatpush2.bf16.msra.mxu0 %v708
      %878 = vmatprep.subr.bf16.mxu0 0
      %879 = vmatpush2.bf16.msra.mxu0 %v707
      %880 = vmatprep.subr.bf16.mxu0 0
      %881 = vmatpush2.bf16.msra.mxu0 %v706
      %882 = vmatprep.mubr.bf16.mxu0 %v413
      %883 = vmatmul.mubr.bf16.gmra.mxu0 %v412
      %v884 = vpop.f32.mrf.mxu0
      %v885 = vadd.f32 %v845, %v884
      %v886 = vpop.f32.mrf.mxu0
      %v887 = vpop.f32.mrf.mxu0
      %v888 = vpop.f32.mrf.mxu0
      %889 = vdwg.mxu0
      %890 = vmatprep.subr.bf16.mxu0 0
      %891 = vmatpush1.bf16.msra.mxu0 %v721
      %892 = vmatprep.subr.bf16.mxu0 0
      %893 = vmatpush1.bf16.msra.mxu0 %v720
      %894 = vmatprep.subr.bf16.mxu0 0
      %895 = vmatpush1.bf16.msra.mxu0 %v719
      %896 = vmatprep.subr.bf16.mxu0 0
      %897 = vmatpush1.bf16.msra.mxu0 %v718
      %898 = vmatprep.subr.bf16.mxu0 0
      %899 = vmatpush1.bf16.msra.mxu0 %v717
      %900 = vmatprep.subr.bf16.mxu0 0
      %901 = vmatpush1.bf16.msra.mxu0 %v716
      %902 = vmatprep.subr.bf16.mxu0 0
      %903 = vmatpush1.bf16.msra.mxu0 %v715
      %904 = vmatprep.subr.bf16.mxu0 0
      %905 = vmatpush1.bf16.msra.mxu0 %v714
      %906 = vmatprep.subr.bf16.mxu0 0
      %907 = vmatpush2.bf16.msra.mxu0 %v729
      %908 = vmatprep.subr.bf16.mxu0 0
      %909 = vmatpush2.bf16.msra.mxu0 %v728
      %910 = vmatprep.subr.bf16.mxu0 0
      %911 = vmatpush2.bf16.msra.mxu0 %v727
      %912 = vmatprep.subr.bf16.mxu0 0
      %913 = vmatpush2.bf16.msra.mxu0 %v726
      %914 = vmatprep.subr.bf16.mxu0 0
      %915 = vmatpush2.bf16.msra.mxu0 %v725
      %916 = vmatprep.subr.bf16.mxu0 0
      %917 = vmatpush2.bf16.msra.mxu0 %v724
      %918 = vmatprep.subr.bf16.mxu0 0
      %919 = vmatpush2.bf16.msra.mxu0 %v723
      %920 = vmatprep.subr.bf16.mxu0 0
      %921 = vmatpush2.bf16.msra.mxu0 %v722
      %922 = vmatprep.mubr.bf16.mxu0 %v415
      %923 = vmatmul.mubr.bf16.gmra.mxu0 %v414
      %v924 = vpop.f32.mrf.mxu0
      %v925 = vadd.f32 %v885, %v924
      %v926 = vpop.f32.mrf.mxu0
      %v927 = vpop.f32.mrf.mxu0
      %v928 = vpop.f32.mrf.mxu0
      %929 = vdwg.mxu0
      %930 = vmatprep.subr.bf16.mxu0 0
      %931 = vmatpush1.bf16.msra.mxu0 %v737
      %932 = vmatprep.subr.bf16.mxu0 0
      %933 = vmatpush1.bf16.msra.mxu0 %v736
      %934 = vmatprep.subr.bf16.mxu0 0
      %935 = vmatpush1.bf16.msra.mxu0 %v735
      %936 = vmatprep.subr.bf16.mxu0 0
      %937 = vmatpush1.bf16.msra.mxu0 %v734
      %938 = vmatprep.subr.bf16.mxu0 0
      %939 = vmatpush1.bf16.msra.mxu0 %v733
      %940 = vmatprep.subr.bf16.mxu0 0
      %941 = vmatpush1.bf16.msra.mxu0 %v732
      %942 = vmatprep.subr.bf16.mxu0 0
      %943 = vmatpush1.bf16.msra.mxu0 %v731
      %944 = vmatprep.subr.bf16.mxu0 0
      %945 = vmatpush1.bf16.msra.mxu0 %v730
      %946 = vmatprep.subr.bf16.mxu0 0
      %947 = vmatpush2.bf16.msra.mxu0 %v745
      %948 = vmatprep.subr.bf16.mxu0 0
      %949 = vmatpush2.bf16.msra.mxu0 %v744
      %950 = vmatprep.subr.bf16.mxu0 0
      %951 = vmatpush2.bf16.msra.mxu0 %v743
      %952 = vmatprep.subr.bf16.mxu0 0
      %953 = vmatpush2.bf16.msra.mxu0 %v742
      %954 = vmatprep.subr.bf16.mxu0 0
      %955 = vmatpush2.bf16.msra.mxu0 %v741
      %956 = vmatprep.subr.bf16.mxu0 0
      %957 = vmatpush2.bf16.msra.mxu0 %v740
      %958 = vmatprep.subr.bf16.mxu0 0
      %959 = vmatpush2.bf16.msra.mxu0 %v739
      %960 = vmatprep.subr.bf16.mxu0 0
      %961 = vmatpush2.bf16.msra.mxu0 %v738
      %962 = vmatprep.mubr.bf16.mxu0 %v417
      %963 = vmatmul.mubr.bf16.gmra.mxu0 %v416
      %v964 = vpop.f32.mrf.mxu0
      %v965 = vadd.f32 %v925, %v964
      %v966 = vpop.f32.mrf.mxu0
      %v967 = vpop.f32.mrf.mxu0
      %v968 = vpop.f32.mrf.mxu0
      %969 = vdwg.mxu0
      %v970 = vadd.f32 %v265, %v965
      %971 = vst [vmem:[#allocation2] sm:$0xff] %v970
      %p972 = scmp.eq.s32.totalorder %s21, 1
      // Predicated region
      $region37: #{_lambda_.5} parent=31 // pred_check
        %p973 = pneg %p972
      $region38: #{_lambda_.5} parent=31 // pred_check_branch
        %975 = sbr.rel (%p973) target = $region40
      $region39: #{_lambda_.5} parent=31 // pred_region
        %v976 = vld [vmem:[#allocation2] sm:$0xff]
        %v977 = vld [vmem:[%s251] sm:$0x1]
        %v979 = vlaneseq
        %v980 = vshrl.u32 %v979, 7
        %v981 = vsub.s32 0, %v980
        %v982 = vrot.slane %v977, %v981
        %v984 = vadd.f32 %v976, %v982
        %v985 = vsub.f32 0.0, %v984
        %v986 = vmul.f32 %v985, 1.442695
        %v987 = vpow.pop %v986
        %v988 = vadd.f32 %v987, 1.0
        %v989 = vrcp.pop %v988
        %v990 = vmul.f32 1.0, %v989
        %991 = vst [vmem:[%s258] sm:$0xff] %v990
      $region40: #{_lambda_.5} parent=31 // pred_fallthru
        _
      %p992 = scmp.lt.s32.totalorder %s19, 0
      %s993 = scalar_select %p992, %s19, 0
      %p994 = scmp.lt.s32.totalorder %s20, 0
      %s995 = scalar_select %p994, %s20, 0
      %s996 = sadd.s32 %s995, %s993
      %s997 = smul.addr %s996, 8
      %s998 = scalar_lea.vmem %s3, %s997
      // Predicated region
      $region41: #{_lambda_.5} parent=31 // pred_check
        %p999 = pneg %p135
      $region42: #{_lambda_.5} parent=31 // pred_check_branch
        %1001 = sbr.rel (%p999) target = $region44
      $region43: #{_lambda_.5} parent=31 // pred_region
        _
      $region44: #{_lambda_.5} parent=31 // pred_fallthru
        _
      // Predicated region
      $region45: #{_lambda_.5} parent=31 // pred_check
        %p1002 = pneg %p135
      $region46: #{_lambda_.5} parent=31 // pred_check_branch
        %1004 = sbr.rel (%p1002) target = $region48
      $region47: #{_lambda_.5} parent=31 // pred_region
        %p1005 = scmp.lt.s32.totalorder %s19, 0
        %s1006 = scalar_select %p1005, %s19, 0
        %p1007 = scmp.lt.s32.totalorder %s20, 0
        %s1008 = scalar_select %p1007, %s20, 0
        %s1009 = sadd.s32 %s1008, %s1006
        %s1010 = smul.addr %s1009, 8
        %s1011 = scalar_lea.vmem %s3, %s1010
      $region48: #{_lambda_.5} parent=31 // pred_fallthru
        _
    $region32: #{_lambda_.5} parent=5 // pred_fallthru
      _
    %p1012 = scmp.le.s32.totalorder 2, %s9
    // Predicated region
    $region49: #{_lambda_.5} parent=5 // pred_check
      %p1013 = pneg %p1012
    $region50: #{_lambda_.5} parent=5 // pred_check_branch
      %1015 = sbr.rel (%p1013) target = $region52
    $region51: #{_lambda_.5} parent=5 // pred_region
      %s1016 = ssub.s32 %s9, 2
    $region52: #{_lambda_.5} parent=5 // pred_fallthru
      _
  $region6: #{_lambda_.5} parent=0 // loop_footer
    %s13 = sadd.s32 1, %s9
  $region7: #{_lambda_.5} parent=0 // loop_footer_branch
    %8 = sbr.rel target = $region3
  $region8: #{_lambda_.5} parent=0 // loop_exit
    _

</llo_original>
